<compile_context>
chip_gen: v5e
topology: v5e:2x2
jax: 0.10.0
libtpu: 0.0.40
codegen_flags: <defaults>
</compile_context>

<pallas_src>
import numpy as np
import jax
import jax.numpy as jnp
from jax.experimental import pallas as pl
from jax.experimental.pallas import tpu as pltpu


def _graph_conv_kernel(x_ref, m_ref, s1_ref, wcat_ref, s2_ref, out_ref):
    # Stage 1: all three SemCHGraphConv branches (W apply + channel-wise adjacency
    # + folded BN) as a single lane-dense matmul (bn, J*Fin) @ (J*Fin, 3*J*Fout).
    y = jnp.dot(x_ref[...], m_ref[...], preferred_element_type=jnp.float32)
    y = jnp.maximum(y + s1_ref[...], 0.0)          # fused bias/BN shift + ReLU
    # Stage 2: channel concat + 1x1 cat_conv + folded cat_bn as one matmul
    # (bn, 3*J*Fout) @ (3*J*Fout, J*Fout).
    o = jnp.dot(y, wcat_ref[...], preferred_element_type=jnp.float32)
    out_ref[...] = jnp.maximum(o + s2_ref[...], 0.0)


def graph_conv_forward(x, fused, *, block_n=512):
    """x: (B, T, J, Fin) float32 -> (B, T, J, Fout) float32."""
    M_all, shift1, Wcat_big, shift2 = fused
    B, T, J, Fin = x.shape
    K = M_all.shape[0]            # J*Fin
    C3 = M_all.shape[1]           # 3*J*Fout
    C1 = Wcat_big.shape[1]        # J*Fout
    Fout = C1 // J
    N = B * T
    xf = x.reshape(N, J * Fin)

    # Tile size: large tiles amortize the ~0.35us per-grid-step pipeline overhead;
    # for small problems shrink so the grid stays >= 2 (two v7x TensorCores).
    bn = max(8, (min(block_n, 1024) // 8) * 8)
    if N < 2 * bn:
        bn = max(8, ((pl.cdiv(N, 2) + 7) // 8) * 8)
    n_pad = pl.cdiv(N, bn) * bn
    if n_pad != N:
        xf = jnp.concatenate([xf, jnp.zeros((n_pad - N, J * Fin), xf.dtype)], axis=0)
    grid = (n_pad // bn,)

    # Explicit VMEM budget: double-buffered x/out tiles, the Y intermediate and
    # the (constant) fused weight matrices, with ~1.5x headroom.
    f32 = 4
    vmem_bytes = f32 * (2 * bn * K          # x tiles (double-buffered)
                        + 2 * bn * C1       # out tiles (double-buffered)
                        + bn * C3           # Y intermediate
                        + 2 * (K * C3 + C3 + C3 * C1 + C1))   # weights + shifts
    vmem_limit = min(int(1.5 * vmem_bytes) + (2 << 20), 64 << 20)

    out = pl.pallas_call(
        _graph_conv_kernel,
        out_shape=jax.ShapeDtypeStruct((n_pad, C1), jnp.float32),
        grid=grid,
        in_specs=[
            pl.BlockSpec((bn, K), lambda i: (i, 0)),      # x tile (lane-dense, 128)
            pl.BlockSpec((K, C3), lambda i: (0, 0)),      # fused branch matrix
            pl.BlockSpec((1, C3), lambda i: (0, 0)),      # fused branch shift
            pl.BlockSpec((C3, C1), lambda i: (0, 0)),     # fused cat_conv matrix
            pl.BlockSpec((1, C1), lambda i: (0, 0)),      # fused cat shift
        ],
        out_specs=pl.BlockSpec((bn, C1), lambda i: (i, 0)),   # lane-dense 512-wide
        compiler_params=pltpu.CompilerParams(
            dimension_semantics=("parallel",),
            vmem_limit_bytes=vmem_limit),
    )(xf, M_all, shift1, Wcat_big, shift2)
    return out[:N].reshape(B, T, J, Fout)


def pack_fused_params(P, J, Fin, Fout):
    """Fold W0/W1, channel-wise adjacency, graph bias, BN and cat_conv/cat_bn into
    two matrices + two shift vectors (host-side, once)."""
    eyeJ = jnp.eye(J, dtype=jnp.float32)
    A = P["A_soft"]                        # (3, Fout, J, J)
    A_diag = A * eyeJ
    A_off = A * (1.0 - eyeJ)
    W0, W1 = P["w0"], P["w1"]              # (3, Fin, Fout)
    bn_s, bn_b = P["bn_scale"], P["bn_shift"]   # (3, Fout)

    # M[g, j, f, i, c] = (A_diag[g,c,i,j]*W0[g,f,c] + A_off[g,c,i,j]*W1[g,f,c]) * bn_s[g,c]
    M = (jnp.einsum("gcij,gfc->gjfic", A_diag, W0)
         + jnp.einsum("gcij,gfc->gjfic", A_off, W1))
    M = M * bn_s[:, None, None, None, :]
    M_all = jnp.concatenate([M[g].reshape(J * Fin, J * Fout) for g in range(3)],
                            axis=1)                                   # (J*Fin, 3*J*Fout)

    shift1 = P["gbias"] * bn_s + bn_b                                 # (3, Fout)
    shift1_all = jnp.concatenate([jnp.tile(shift1[g], (J,)) for g in range(3)],
                                 axis=0).reshape(1, 3 * J * Fout)

    wcat3 = P["wcat3"]                     # (3, Fout_in_per_branch, Fout_out)
    cat_s, cat_b, cbias = P["cat_scale"], P["cat_shift"], P["cbias"]  # (Fout,)
    blocks = [jnp.einsum("ij,co->icjo", eyeJ, wcat3[g]).reshape(J * Fout, J * Fout)
              for g in range(3)]
    Wcat_big = jnp.concatenate(blocks, axis=0)                        # (3*J*Fout, J*Fout)
    Wcat_big = Wcat_big * jnp.tile(cat_s, (J,))[None, :]
    shift2 = jnp.tile(cbias * cat_s + cat_b, (J,)).reshape(1, J * Fout)
    return M_all, shift1_all, Wcat_big, shift2


def make_params(key, J, Fin, Fout, eps=1e-5):
    ks = jax.random.split(key, 12)

    # chain-skeleton adjacency with self loops (only the >0 mask matters)
    adj = np.eye(J, dtype=np.float32)
    for i in range(J - 1):
        adj[i, i + 1] = 1.0
        adj[i + 1, i] = 1.0
    adj = jnp.asarray(adj)
    adj2 = adj @ adj              # adj.matrix_power(2)
    adj3 = adj2 @ adj             # adj.matrix_power(3)
    masks = jnp.stack([adj > 0, adj2 > 0, adj3 > 0])                  # (3, J, J)

    # channel-wise edge weights 'e', scattered into mask, softmaxed over neighbors
    e = 1.0 + 0.1 * jax.random.normal(ks[0], (3, Fout, J, J), jnp.float32)
    logits = jnp.where(masks[:, None, :, :], e, -9e15)
    A_soft = jax.nn.softmax(logits, axis=-1)                          # (3, Fout, J, J)

    # SemCHGraphConv weights (2, Fin, Fout) per branch + bias
    w = 0.3 * jax.random.normal(ks[1], (3, 2, Fin, Fout), jnp.float32)
    stdv = 1.0 / np.sqrt(Fout)
    gbias = jax.random.uniform(ks[2], (3, Fout), jnp.float32, -stdv, stdv)

    # bn_1/2/3 (inference) folded into per-channel scale/shift
    gamma = 1.0 + 0.1 * jax.random.normal(ks[3], (3, Fout), jnp.float32)
    beta = 0.1 * jax.random.normal(ks[4], (3, Fout), jnp.float32)
    rmean = 0.1 * jax.random.normal(ks[5], (3, Fout), jnp.float32)
    rvar = 1.0 + 0.1 * jax.random.uniform(ks[6], (3, Fout), jnp.float32)
    bn_scale = gamma / jnp.sqrt(rvar + eps)
    bn_shift = beta - rmean * bn_scale

    # cat_conv: Conv2d(3*Fout, Fout, 1), bias init 0
    wcat = 0.2 * jax.random.normal(ks[7], (Fout, 3 * Fout), jnp.float32)
    wcat_t = wcat.T                                                   # (3*Fout, Fout)
    wcat3 = wcat_t.reshape(3, Fout, Fout)
    cbias = jnp.zeros((Fout,), jnp.float32)

    # cat_bn (inference)
    cgamma = 1.0 + 0.1 * jax.random.normal(ks[8], (Fout,), jnp.float32)
    cbeta = 0.1 * jax.random.normal(ks[9], (Fout,), jnp.float32)
    cmean = 0.1 * jax.random.normal(ks[10], (Fout,), jnp.float32)
    cvar = 1.0 + 0.1 * jax.random.uniform(ks[11], (Fout,), jnp.float32)
    cat_scale = cgamma / jnp.sqrt(cvar + eps)
    cat_shift = cbeta - cmean * cat_scale

    return dict(w0=w[:, 0], w1=w[:, 1], gbias=gbias, A_soft=A_soft,
                bn_scale=bn_scale, bn_shift=bn_shift,
                wcat_t=wcat_t, wcat3=wcat3, cbias=cbias,
                cat_scale=cat_scale, cat_shift=cat_shift)


def ref_forward(x, P):
    """Pure-JAX reference mirroring the PyTorch forward (eval mode, no dropout)."""
    J = x.shape[2]
    eyeJ = jnp.eye(J, dtype=jnp.float32)
    hp = "highest"
    outs = []
    for g in range(3):
        h0 = jnp.einsum("btjf,fo->btjo", x, P["w0"][g], precision=hp)
        h1 = jnp.einsum("btjf,fo->btjo", x, P["w1"][g], precision=hp)
        A = P["A_soft"][g]
        y = (jnp.einsum("cij,btjc->btic", A * eyeJ, h0, precision=hp)
             + jnp.einsum("cij,btjc->btic", A * (1.0 - eyeJ), h1, precision=hp)
             + P["gbias"][g])
        y = y * P["bn_scale"][g] + P["bn_shift"][g]
        outs.append(jnp.maximum(y, 0.0))
    cat = jnp.concatenate(outs, axis=-1)
    o = jnp.einsum("btjk,ko->btjo", cat, P["wcat_t"], precision=hp) + P["cbias"]
    o = o * P["cat_scale"] + P["cat_shift"]
    return jnp.maximum(o, 0.0)


if __name__ == "__main__":
    # small shapes: batch=2, frames=8, joints=16, input_dim=8, output_dim=32
    B, T, J, Fin, Fout = 2, 8, 16, 8, 32
    key = jax.random.PRNGKey(0)
    kx, kp = jax.random.split(key)
    x = jax.random.normal(kx, (B, T, J, Fin), jnp.float32)
    P = make_params(kp, J, Fin, Fout)
    fused = pack_fused_params(P, J, Fin, Fout)

    out = graph_conv_forward(x, fused)
    out = jax.block_until_ready(out)

    ref = ref_forward(x, P)
    np.testing.assert_allclose(np.asarray(out), np.asarray(ref), rtol=1e-2, atol=1e-3)
    print("KERNEL_OK")
</pallas_src>

<mosaic_0001>
module attributes {stable_mosaic.version = 11 : i64} {
  func.func @_graph_conv_kernel(%arg0: i32, %arg1: memref<8x128xf32, #tpu.memory_space<vmem>>, %arg2: memref<128x1536xf32, #tpu.memory_space<vmem>>, %arg3: memref<1x1536xf32, #tpu.memory_space<vmem>>, %arg4: memref<1536x512xf32, #tpu.memory_space<vmem>>, %arg5: memref<1x512xf32, #tpu.memory_space<vmem>>, %arg6: memref<8x512xf32, #tpu.memory_space<vmem>>) attributes {dimension_semantics = [#tpu.dimension_semantics<parallel>], iteration_bounds = array<i64: 2>, scalar_prefetch = 0 : i64, scratch_operands = 0 : i64, tpu.core_type = #tpu.core_type<tc>, window_params = [{transform_indices = @transform_0, window_bounds = array<i64: 8, 128>}, {pipeline_mode = #tpu.pipeline_mode<synchronous>, transform_indices = @transform_1, window_bounds = array<i64: 128, 1536>}, {pipeline_mode = #tpu.pipeline_mode<synchronous>, transform_indices = @transform_2, window_bounds = array<i64: 1, 1536>}, {pipeline_mode = #tpu.pipeline_mode<synchronous>, transform_indices = @transform_3, window_bounds = array<i64: 1536, 512>}, {pipeline_mode = #tpu.pipeline_mode<synchronous>, transform_indices = @transform_4, window_bounds = array<i64: 1, 512>}, {transform_indices = @transform_5, window_bounds = array<i64: 8, 512>}]} {
    %c0 = arith.constant 0 : index
    %c0_0 = arith.constant 0 : index
    %0 = vector.load %arg1[%c0, %c0_0] : memref<8x128xf32, #tpu.memory_space<vmem>>, vector<8x128xf32>
    %c0_1 = arith.constant 0 : index
    %c0_2 = arith.constant 0 : index
    %1 = vector.load %arg2[%c0_1, %c0_2] : memref<128x1536xf32, #tpu.memory_space<vmem>>, vector<128x1536xf32>
    %cst = arith.constant dense<0.000000e+00> : vector<8x1536xf32>
    %2 = tpu.matmul %0, %1, %cst {dimension_numbers = #tpu.dot_dimension_numbers<[1], [0], [0], [1], [0, 0, 1, 1], [], []>} : vector<8x128xf32>, vector<128x1536xf32>, vector<8x1536xf32> -> vector<8x1536xf32>
    %c0_3 = arith.constant 0 : index
    %c0_4 = arith.constant 0 : index
    %3 = vector.load %arg3[%c0_3, %c0_4] : memref<1x1536xf32, #tpu.memory_space<vmem>>, vector<1x1536xf32>
    %4 = vector.broadcast %3 : vector<1x1536xf32> to vector<8x1536xf32>
    %5 = arith.addf %2, %4 : vector<8x1536xf32>
    %cst_5 = arith.constant 0.000000e+00 : f32
    %6 = vector.broadcast %cst_5 : f32 to vector<8x1536xf32>
    %7 = arith.maximumf %5, %6 : vector<8x1536xf32>
    %c0_6 = arith.constant 0 : index
    %c0_7 = arith.constant 0 : index
    %8 = vector.load %arg4[%c0_6, %c0_7] : memref<1536x512xf32, #tpu.memory_space<vmem>>, vector<1536x512xf32>
    %cst_8 = arith.constant dense<0.000000e+00> : vector<8x512xf32>
    %9 = tpu.matmul %7, %8, %cst_8 {dimension_numbers = #tpu.dot_dimension_numbers<[1], [0], [0], [1], [0, 0, 1, 1], [], []>} : vector<8x1536xf32>, vector<1536x512xf32>, vector<8x512xf32> -> vector<8x512xf32>
    %c0_9 = arith.constant 0 : index
    %c0_10 = arith.constant 0 : index
    %10 = vector.load %arg5[%c0_9, %c0_10] : memref<1x512xf32, #tpu.memory_space<vmem>>, vector<1x512xf32>
    %11 = vector.broadcast %10 : vector<1x512xf32> to vector<8x512xf32>
    %12 = arith.addf %9, %11 : vector<8x512xf32>
    %cst_11 = arith.constant 0.000000e+00 : f32
    %13 = vector.broadcast %cst_11 : f32 to vector<8x512xf32>
    %14 = arith.maximumf %12, %13 : vector<8x512xf32>
    %c0_12 = arith.constant 0 : index
    %c0_13 = arith.constant 0 : index
    %15 = vector.load %arg6[%c0_12, %c0_13] : memref<8x512xf32, #tpu.memory_space<vmem>>, vector<8x512xf32>
    tpu.vector_store %arg6[%c0_12, %c0_13], %14 {strides = array<i32>} : memref<8x512xf32, #tpu.memory_space<vmem>>, vector<8x512xf32>,
    return
  }
  func.func @transform_0(%arg0: i32) -> (i32, i32) {
    %c0_i32 = arith.constant 0 : i32
    %c0_i32_0 = arith.constant 0 : i32
    return %arg0, %c0_i32 : i32, i32
  }
  func.func @transform_1(%arg0: i32) -> (i32, i32) {
    %c0_i32 = arith.constant 0 : i32
    %c0_i32_0 = arith.constant 0 : i32
    %c0_i32_1 = arith.constant 0 : i32
    return %c0_i32, %c0_i32_0 : i32, i32
  }
  func.func @transform_2(%arg0: i32) -> (i32, i32) {
    %c0_i32 = arith.constant 0 : i32
    %c0_i32_0 = arith.constant 0 : i32
    %c0_i32_1 = arith.constant 0 : i32
    return %c0_i32, %c0_i32_0 : i32, i32
  }
  func.func @transform_3(%arg0: i32) -> (i32, i32) {
    %c0_i32 = arith.constant 0 : i32
    %c0_i32_0 = arith.constant 0 : i32
    %c0_i32_1 = arith.constant 0 : i32
    return %c0_i32, %c0_i32_0 : i32, i32
  }
  func.func @transform_4(%arg0: i32) -> (i32, i32) {
    %c0_i32 = arith.constant 0 : i32
    %c0_i32_0 = arith.constant 0 : i32
    %c0_i32_1 = arith.constant 0 : i32
    return %c0_i32, %c0_i32_0 : i32, i32
  }
  func.func @transform_5(%arg0: i32) -> (i32, i32) {
    %c0_i32 = arith.constant 0 : i32
    %c0_i32_0 = arith.constant 0 : i32
    return %arg0, %c0_i32 : i32, i32
  }
}

</mosaic_0001>

<llo_original>
// kernel: tpu_custom_call.1
$region0: #{tpu_custom_call.1}
  #allocation0 [shape = 'u32[]', space=smem, size = 0x4, offset = 0x4, fixed_abs, tag = 'smem constant byte address 0x4 - core index']
  #allocation1 [shape = 'u32[72,128]{1,0:T(1,128)}', space=vmem, size = 0x9000, scoped, tag = 'internal scratch']
  %s0 = inlined_call_operand.hbm [shape: f32[16,128], index: 0, kind: input, shape index: {}]
  %s1 = inlined_call_operand.hbm [shape: f32[128,1536], index: 1, kind: input, shape index: {}]
  %s2 = inlined_call_operand.hbm [shape: f32[1,1536], index: 2, kind: input, shape index: {}]
  %s3 = inlined_call_operand.hbm [shape: f32[1536,512], index: 3, kind: input, shape index: {}]
  %s4 = inlined_call_operand.hbm [shape: f32[1,512], index: 4, kind: input, shape index: {}]
  %s5 = inlined_call_operand.hbm [shape: f32[16,512], index: 5, kind: output, shape index: {}]
  %s6 = sld [smem:[#allocation0]]
  $region73: #{tpu_custom_call.1} parent=0
    _
  %s8 = ssub.s32 1, %s6
  %s9 = scalar_select 0, %s8, %s6
  $region1: #{tpu_custom_call.1} parent=0
    #allocation2 [shape = 'u8[8192]{0}', space=vmem, size = 0x2000, scoped, tag = 'input window, operand 0']
    #allocation3 [shape = 's32[2]{0}', space=sflag, size = 0x8, scoped, tag = 'scoped memory for tpu_custom_call.1']
    #allocation4 [shape = 's32[2]{0}', space=sflag, size = 0x8, scoped, tag = 'scoped memory for tpu_custom_call.1']
    #allocation5 [shape = 'u8[786432]{0}', space=vmem, size = 0xc0000, scoped, tag = 'input window, operand 1, single buffered']
    #allocation6 [shape = 's32[1]{0}', space=sflag, size = 0x4, scoped, tag = 'scoped memory for tpu_custom_call.1']
    #allocation7 [shape = 'u8[6144]{0}', space=vmem, size = 0x1800, scoped, tag = 'input window, operand 2, single buffered']
    #allocation8 [shape = 'u8[3145728]{0}', space=vmem, size = 0x300000, scoped, tag = 'input window, operand 3, single buffered']
    #allocation9 [shape = 's32[1]{0}', space=sflag, size = 0x4, scoped, tag = 'scoped memory for tpu_custom_call.1']
    #allocation10 [shape = 'u8[2048]{0}', space=vmem, size = 0x800, scoped, tag = 'input window, operand 4, single buffered']
    #allocation11 [shape = 'u8[32768]{0}', space=vmem, size = 0x8000, scoped, tag = 'output window, operand 0']
    %10 = vsyncpa [#allocation3], 0
    %s11 = scalar_lea.sflag [#allocation3], 1
    %12 = vsyncpa %s11, 0
    %13 = vsyncpa [#allocation6], 0
    %14 = vsyncpa [#allocation9], 0
    %15 = vsyncpa [#allocation4], 0
    %s16 = scalar_lea.sflag [#allocation4], 1
    %17 = vsyncpa %s16, 0
    loop: start=0, step=1, limit=4
    $region2: #{tpu_custom_call.1} parent=1 // loop_pre_header
      _
    $region3: #{tpu_custom_call.1} parent=1 // loop_header
      %s19 = sphi 0, %s23
      %p20 = scmp.ge.s32.totalorder %s19, 4
      %s29 = sphi 0, %s31
      %s32 = sphi 0, %s29
      %s33 = sphi 0, %s32
      %s49 = sphi 0, %s33
      %s53 = sphi 0, %s53
      %s55 = sphi 0, %s53
      %s56 = sphi 0, %s55
      %s70 = sphi 0, %s56
      %s74 = sphi 0, %s74
      %s76 = sphi 0, %s74
      %s77 = sphi 0, %s76
      %s91 = sphi 0, %s77
      %s95 = sphi 0, %s95
      %s97 = sphi 0, %s95
      %s98 = sphi 0, %s97
      %s112 = sphi 0, %s98
      %s116 = sphi 0, %s116
      %s118 = sphi 0, %s116
      %s119 = sphi 0, %s118
      %s133 = sphi 0, %s119
      %s139 = sphi 0, %s141
      %s142 = sphi 0, %s139
      %s143 = sphi 0, %s142
      %s159 = sphi 0, %s143
    $region4: #{tpu_custom_call.1} parent=1 // loop_header_branch
      %22 = sbr.rel (%p20) target = $region8
    $region5: #{tpu_custom_call.1} parent=1 // loop_body
      %s24 = ssub.s32 %s19, 1
      %s25 = ssub.s32 %s19, 2
      %s26 = sadd.s32 %s19, 1
      %s27 = ssub.s32 %s19, %s26
      %p28 = scmp.eq.s32.totalorder %s27, 0
      %s30 = sadd.s32 %s29, 1
      %s31 = scalar_select %p28, %s29, %s30
      %p34 = pneg %p28
      %p35 = scmp.eq.s32.totalorder %s19, 1
      %p36 = por %p34, %p35
      %p37 = scmp.ne.s32.totalorder %s29, %s32
      %p38 = scmp.eq.s32.totalorder %s19, 0
      %p39 = por %p37, %p38
      %p40 = scmp.ne.s32.totalorder %s29, %s32
      %p41 = scmp.eq.s32.totalorder %s24, 1
      %p42 = por %p40, %p41
      %p43 = scmp.ne.s32.totalorder %s32, %s33
      %p44 = scmp.eq.s32.totalorder %s24, 0
      %p45 = por %p43, %p44
      %p46 = scmp.ne.s32.totalorder %s32, %s33
      %p47 = scmp.eq.s32.totalorder %s25, 1
      %p48 = por %p46, %p47
      %p50 = scmp.ne.s32.totalorder %s33, %s49
      %p51 = scmp.eq.s32.totalorder %s25, 0
      %p52 = por %p50, %p51
      %s54 = sadd.s32 %s53, 1
      %p57 = scmp.eq.s32.totalorder %s19, 1
      %p58 = scmp.ne.s32.totalorder %s53, %s55
      %p59 = scmp.eq.s32.totalorder %s19, 0
      %p60 = por %p58, %p59
      %p61 = scmp.ne.s32.totalorder %s53, %s55
      %p62 = scmp.eq.s32.totalorder %s24, 1
      %p63 = por %p61, %p62
      %p64 = scmp.ne.s32.totalorder %s55, %s56
      %p65 = scmp.eq.s32.totalorder %s24, 0
      %p66 = por %p64, %p65
      %p67 = scmp.ne.s32.totalorder %s55, %s56
      %p68 = scmp.eq.s32.totalorder %s25, 1
      %p69 = por %p67, %p68
      %p71 = scmp.ne.s32.totalorder %s56, %s70
      %p72 = scmp.eq.s32.totalorder %s25, 0
      %p73 = por %p71, %p72
      %s75 = sadd.s32 %s74, 1
      %p78 = scmp.eq.s32.totalorder %s19, 1
      %p79 = scmp.ne.s32.totalorder %s74, %s76
      %p80 = scmp.eq.s32.totalorder %s19, 0
      %p81 = por %p79, %p80
      %p82 = scmp.ne.s32.totalorder %s74, %s76
      %p83 = scmp.eq.s32.totalorder %s24, 1
      %p84 = por %p82, %p83
      %p85 = scmp.ne.s32.totalorder %s76, %s77
      %p86 = scmp.eq.s32.totalorder %s24, 0
      %p87 = por %p85, %p86
      %p88 = scmp.ne.s32.totalorder %s76, %s77
      %p89 = scmp.eq.s32.totalorder %s25, 1
      %p90 = por %p88, %p89
      %p92 = scmp.ne.s32.totalorder %s77, %s91
      %p93 = scmp.eq.s32.totalorder %s25, 0
      %p94 = por %p92, %p93
      %s96 = sadd.s32 %s95, 1
      %p99 = scmp.eq.s32.totalorder %s19, 1
      %p100 = scmp.ne.s32.totalorder %s95, %s97
      %p101 = scmp.eq.s32.totalorder %s19, 0
      %p102 = por %p100, %p101
      %p103 = scmp.ne.s32.totalorder %s95, %s97
      %p104 = scmp.eq.s32.totalorder %s24, 1
      %p105 = por %p103, %p104
      %p106 = scmp.ne.s32.totalorder %s97, %s98
      %p107 = scmp.eq.s32.totalorder %s24, 0
      %p108 = por %p106, %p107
      %p109 = scmp.ne.s32.totalorder %s97, %s98
      %p110 = scmp.eq.s32.totalorder %s25, 1
      %p111 = por %p109, %p110
      %p113 = scmp.ne.s32.totalorder %s98, %s112
      %p114 = scmp.eq.s32.totalorder %s25, 0
      %p115 = por %p113, %p114
      %s117 = sadd.s32 %s116, 1
      %p120 = scmp.eq.s32.totalorder %s19, 1
      %p121 = scmp.ne.s32.totalorder %s116, %s118
      %p122 = scmp.eq.s32.totalorder %s19, 0
      %p123 = por %p121, %p122
      %p124 = scmp.ne.s32.totalorder %s116, %s118
      %p125 = scmp.eq.s32.totalorder %s24, 1
      %p126 = por %p124, %p125
      %p127 = scmp.ne.s32.totalorder %s118, %s119
      %p128 = scmp.eq.s32.totalorder %s24, 0
      %p129 = por %p127, %p128
      %p130 = scmp.ne.s32.totalorder %s118, %s119
      %p131 = scmp.eq.s32.totalorder %s25, 1
      %p132 = por %p130, %p131
      %p134 = scmp.ne.s32.totalorder %s119, %s133
      %p135 = scmp.eq.s32.totalorder %s25, 0
      %p136 = por %p134, %p135
      %s137 = ssub.s32 %s19, %s26
      %p138 = scmp.eq.s32.totalorder %s137, 0
      %s140 = sadd.s32 %s139, 1
      %s141 = scalar_select %p138, %s139, %s140
      %p144 = pneg %p138
      %p145 = scmp.eq.s32.totalorder %s19, 1
      %p146 = por %p144, %p145
      %p147 = scmp.ne.s32.totalorder %s139, %s142
      %p148 = scmp.eq.s32.totalorder %s19, 0
      %p149 = por %p147, %p148
      %p150 = scmp.ne.s32.totalorder %s139, %s142
      %p151 = scmp.eq.s32.totalorder %s24, 1
      %p152 = por %p150, %p151
      %p153 = scmp.ne.s32.totalorder %s142, %s143
      %p154 = scmp.eq.s32.totalorder %s24, 0
      %p155 = por %p153, %p154
      %p156 = scmp.ne.s32.totalorder %s142, %s143
      %p157 = scmp.eq.s32.totalorder %s25, 1
      %p158 = por %p156, %p157
      %p160 = scmp.ne.s32.totalorder %s143, %s159
      %p161 = scmp.eq.s32.totalorder %s25, 0
      %p162 = por %p160, %p161
      %p163 = scmp.le.s32.totalorder 1, %s19
      %p164 = scmp.lt.s32.totalorder %s19, 3
      %p165 = pnand %p163, %p164
      %p166 = pneg %p165
      // Predicated region
      $region9: #{tpu_custom_call.1} parent=5 // pred_check
        _
      $region10: #{tpu_custom_call.1} parent=5 // pred_check_branch
        %168 = sbr.rel (%p165) target = $region12
      $region11: #{tpu_custom_call.1} parent=5 // pred_region
        %s169 = ssub.s32 %s19, 1
        // Predicated region
        $region13: #{tpu_custom_call.1} parent=11 // pred_check
          %p170 = pneg %p66
        $region14: #{tpu_custom_call.1} parent=11 // pred_check_branch
          %172 = sbr.rel (%p170) target = $region16
        $region15: #{tpu_custom_call.1} parent=11 // pred_region
          %174 = vsyncadd [#allocation6], 0
          %s175 = sshll.u32 %s1, 4
          %s176 = int_to_ptr.hbm [resolvable:$true] %s175
          %s177 = sshll.u32 [#allocation5], 4
          %s178 = int_to_ptr.vmem [resolvable:$true] %s177
          %183 = dma.hbm_to_vmem [thread:$0]  %s176, 24576, %s178, [#allocation6], 1536, 1536, 96
        $region16: #{tpu_custom_call.1} parent=11 // pred_fallthru
          _
        // Predicated region
        $region17: #{tpu_custom_call.1} parent=11 // pred_check
          %p184 = pneg %p87
        $region18: #{tpu_custom_call.1} parent=11 // pred_check_branch
          %186 = sbr.rel (%p184) target = $region20
        $region19: #{tpu_custom_call.1} parent=11 // pred_region
          %188 = vsyncadd [#allocation6], 0
          %s190 = sshll.u32 %s2, 4
          %s191 = int_to_ptr.hbm [resolvable:$true] %s190
          %s192 = sshll.u32 [#allocation7], 4
          %s193 = int_to_ptr.vmem [resolvable:$true] %s192
          %195 = dma.hbm_to_vmem [thread:$0]  %s191, 192, %s193, [#allocation6]
        $region20: #{tpu_custom_call.1} parent=11 // pred_fallthru
          _
        // Predicated region
        $region21: #{tpu_custom_call.1} parent=11 // pred_check
          %p196 = pneg %p108
        $region22: #{tpu_custom_call.1} parent=11 // pred_check_branch
          %198 = sbr.rel (%p196) target = $region24
        $region23: #{tpu_custom_call.1} parent=11 // pred_region
          %200 = vsyncadd [#allocation9], 0
          %s201 = sshll.u32 %s3, 4
          %s202 = int_to_ptr.hbm [resolvable:$true] %s201
          %s203 = sshll.u32 [#allocation8], 4
          %s204 = int_to_ptr.vmem [resolvable:$true] %s203
          %209 = dma.hbm_to_vmem [thread:$0]  %s202, 98304, %s204, [#allocation9], 512, 512, 32
        $region24: #{tpu_custom_call.1} parent=11 // pred_fallthru
          _
        // Predicated region
        $region25: #{tpu_custom_call.1} parent=11 // pred_check
          %p210 = pneg %p129
        $region26: #{tpu_custom_call.1} parent=11 // pred_check_branch
          %212 = sbr.rel (%p210) target = $region28
        $region27: #{tpu_custom_call.1} parent=11 // pred_region
          %214 = vsyncadd [#allocation9], 0
          %s216 = sshll.u32 %s4, 4
          %s217 = int_to_ptr.hbm [resolvable:$true] %s216
          %s218 = sshll.u32 [#allocation10], 4
          %s219 = int_to_ptr.vmem [resolvable:$true] %s218
          %221 = dma.hbm_to_vmem [thread:$0]  %s217, 64, %s219, [#allocation9]
        $region28: #{tpu_custom_call.1} parent=11 // pred_fallthru
          _
      $region12: #{tpu_custom_call.1} parent=5 // pred_fallthru
        _
      %p222 = scmp.lt.s32.totalorder %s19, 2
      // Predicated region
      $region29: #{tpu_custom_call.1} parent=5 // pred_check
        %p223 = pneg %p222
      $region30: #{tpu_custom_call.1} parent=5 // pred_check_branch
        %225 = sbr.rel (%p223) target = $region32
      $region31: #{tpu_custom_call.1} parent=5 // pred_region
        // Predicated region
        $region33: #{tpu_custom_call.1} parent=31 // pred_check
          %p226 = pneg %p39
        $region34: #{tpu_custom_call.1} parent=31 // pred_check_branch
          %228 = sbr.rel (%p226) target = $region36
        $region35: #{tpu_custom_call.1} parent=31 // pred_region
          %s229 = sand.u32 %s29, 1
          %s230 = scalar_lea.sflag [#allocation3], %s229
          %s231 = sand.u32 %s29, 1
          %s232 = smul.addr %s231, 8
          %s233 = scalar_lea.vmem [#allocation2], %s232
          %235 = vsyncadd %s230, 0
          %s236 = smul.addr %s19, 8
          %s237 = scalar_lea.hbm %s0, %s236
          %s239 = sshll.u32 %s237, 4
          %s240 = int_to_ptr.hbm [resolvable:$true] %s239
          %s241 = sshll.u32 %s233, 4
          %s242 = int_to_ptr.vmem [resolvable:$true] %s241
          %244 = dma.hbm_to_vmem [thread:$0]  %s240, 128, %s242, %s230
        $region36: #{tpu_custom_call.1} parent=31 // pred_fallthru
          _
      $region32: #{tpu_custom_call.1} parent=5 // pred_fallthru
        _
      %p245 = scmp.le.s32.totalorder 1, %s19
      %p246 = scmp.lt.s32.totalorder %s19, 3
      %p247 = pnand %p245, %p246
      %p248 = pneg %p247
      // Predicated region
      $region37: #{tpu_custom_call.1} parent=5 // pred_check
        _
      $region38: #{tpu_custom_call.1} parent=5 // pred_check_branch
        %250 = sbr.rel (%p247) target = $region40
      $region39: #{tpu_custom_call.1} parent=5 // pred_region
        %s251 = ssub.s32 %s19, 1
        %s252 = sand.u32 %s32, 1
        %s253 = scalar_lea.sflag [#allocation3], %s252
        %s254 = sand.u32 %s32, 1
        %s255 = smul.addr %s254, 8
        %s256 = scalar_lea.vmem [#allocation2], %s255
        // Predicated region
        $region41: #{tpu_custom_call.1} parent=39 // pred_check
          %p257 = pneg %p45
        $region42: #{tpu_custom_call.1} parent=39 // pred_check_branch
          %259 = sbr.rel (%p257) target = $region44
        $region43: #{tpu_custom_call.1} parent=39 // pred_region
          %261 = dma.done %s253, 128
        $region44: #{tpu_custom_call.1} parent=39 // pred_fallthru
          _
        // Predicated region
        $region45: #{tpu_custom_call.1} parent=39 // pred_check
          %p262 = pneg %p66
        $region46: #{tpu_custom_call.1} parent=39 // pred_check_branch
          %264 = sbr.rel (%p262) target = $region48
        $region47: #{tpu_custom_call.1} parent=39 // pred_region
          %266 = dma.done [#allocation6], 24576
        $region48: #{tpu_custom_call.1} parent=39 // pred_fallthru
          _
        // Predicated region
        $region49: #{tpu_custom_call.1} parent=39 // pred_check
          %p267 = pneg %p87
        $region50: #{tpu_custom_call.1} parent=39 // pred_check_branch
          %269 = sbr.rel (%p267) target = $region52
        $region51: #{tpu_custom_call.1} parent=39 // pred_region
          %271 = dma.done [#allocation6], 192
        $region52: #{tpu_custom_call.1} parent=39 // pred_fallthru
          _
        // Predicated region
        $region53: #{tpu_custom_call.1} parent=39 // pred_check
          %p272 = pneg %p108
        $region54: #{tpu_custom_call.1} parent=39 // pred_check_branch
          %274 = sbr.rel (%p272) target = $region56
        $region55: #{tpu_custom_call.1} parent=39 // pred_region
          %276 = dma.done [#allocation9], 98304
        $region56: #{tpu_custom_call.1} parent=39 // pred_fallthru
          _
        // Predicated region
        $region57: #{tpu_custom_call.1} parent=39 // pred_check
          %p277 = pneg %p129
        $region58: #{tpu_custom_call.1} parent=39 // pred_check_branch
          %279 = sbr.rel (%p277) target = $region60
        $region59: #{tpu_custom_call.1} parent=39 // pred_region
          %281 = dma.done [#allocation9], 64
        $region60: #{tpu_custom_call.1} parent=39 // pred_fallthru
          _
        %s282 = sand.u32 %s32, 1
        %s283 = scalar_lea.sflag [#allocation3], %s282
        %s284 = sand.u32 %s32, 1
        %s285 = smul.addr %s284, 8
        %s286 = scalar_lea.vmem [#allocation2], %s285
        %p287 = pneg %p45
        %p288 = pneg %p42
        %p289 = pneg %p66
        %p290 = pneg %p63
        %p291 = pneg %p87
        %p292 = pneg %p84
        %p293 = pneg %p108
        %p294 = pneg %p105
        %p295 = pneg %p129
        %p296 = pneg %p126
        %p297 = pneg %p155
        %p298 = pneg %p152
        %s299 = sand.u32 %s142, 1
        %s300 = scalar_lea.sflag [#allocation4], %s299
        %s301 = sand.u32 %s142, 1
        %s302 = smul.addr %s301, 32
        %s303 = scalar_lea.vmem [#allocation11], %s302
        %v304 = vld [vmem:[%s256] sm:$0xff]
        %v305 = vld [vmem:[#allocation5] sm:$0xff]
        %v306 = vld [vmem:[#allocation5 + $0x8] sm:$0xff]
        %v307 = vld [vmem:[#allocation5 + $0x10] sm:$0xff]
        %v308 = vld [vmem:[#allocation5 + $0x18] sm:$0xff]
        %v309 = vld [vmem:[#allocation5 + $0x20] sm:$0xff]
        %v310 = vld [vmem:[#allocation5 + $0x28] sm:$0xff]
        %v311 = vld [vmem:[#allocation5 + $0x30] sm:$0xff]
        %v312 = vld [vmem:[#allocation5 + $0x38] sm:$0xff]
        %v313 = vld [vmem:[#allocation5 + $0x40] sm:$0xff]
        %v314 = vld [vmem:[#allocation5 + $0x48] sm:$0xff]
        %v315 = vld [vmem:[#allocation5 + $0x50] sm:$0xff]
        %v316 = vld [vmem:[#allocation5 + $0x58] sm:$0xff]
        %v317 = vld [vmem:[#allocation5 + $0x60] sm:$0xff]
        %v318 = vld [vmem:[#allocation5 + $0x68] sm:$0xff]
        %v319 = vld [vmem:[#allocation5 + $0x70] sm:$0xff]
        %v320 = vld [vmem:[#allocation5 + $0x78] sm:$0xff]
        %v321 = vld [vmem:[#allocation5 + $0x80] sm:$0xff]
        %v322 = vld [vmem:[#allocation5 + $0x88] sm:$0xff]
        %v323 = vld [vmem:[#allocation5 + $0x90] sm:$0xff]
        %v324 = vld [vmem:[#allocation5 + $0x98] sm:$0xff]
        %v325 = vld [vmem:[#allocation5 + $0xa0] sm:$0xff]
        %v326 = vld [vmem:[#allocation5 + $0xa8] sm:$0xff]
        %v327 = vld [vmem:[#allocation5 + $0xb0] sm:$0xff]
        %v328 = vld [vmem:[#allocation5 + $0xb8] sm:$0xff]
        %v329 = vld [vmem:[#allocation5 + $0xc0] sm:$0xff]
        %v330 = vld [vmem:[#allocation5 + $0xc8] sm:$0xff]
        %v331 = vld [vmem:[#allocation5 + $0xd0] sm:$0xff]
        %v332 = vld [vmem:[#allocation5 + $0xd8] sm:$0xff]
        %v333 = vld [vmem:[#allocation5 + $0xe0] sm:$0xff]
        %v334 = vld [vmem:[#allocation5 + $0xe8] sm:$0xff]
        %v335 = vld [vmem:[#allocation5 + $0xf0] sm:$0xff]
        %v336 = vld [vmem:[#allocation5 + $0xf8] sm:$0xff]
        %v337 = vld [vmem:[#allocation5 + $0x100] sm:$0xff]
        %v338 = vld [vmem:[#allocation5 + $0x108] sm:$0xff]
        %v339 = vld [vmem:[#allocation5 + $0x110] sm:$0xff]
        %v340 = vld [vmem:[#allocation5 + $0x118] sm:$0xff]
        %v341 = vld [vmem:[#allocation5 + $0x120] sm:$0xff]
        %v342 = vld [vmem:[#allocation5 + $0x128] sm:$0xff]
        %v343 = vld [vmem:[#allocation5 + $0x130] sm:$0xff]
        %v344 = vld [vmem:[#allocation5 + $0x138] sm:$0xff]
        %v345 = vld [vmem:[#allocation5 + $0x140] sm:$0xff]
        %v346 = vld [vmem:[#allocation5 + $0x148] sm:$0xff]
        %v347 = vld [vmem:[#allocation5 + $0x150] sm:$0xff]
        %v348 = vld [vmem:[#allocation5 + $0x158] sm:$0xff]
        %v349 = vld [vmem:[#allocation5 + $0x160] sm:$0xff]
        %v350 = vld [vmem:[#allocation5 + $0x168] sm:$0xff]
        %v351 = vld [vmem:[#allocation5 + $0x170] sm:$0xff]
        %v352 = vld [vmem:[#allocation5 + $0x178] sm:$0xff]
        %v353 = vld [vmem:[#allocation5 + $0x180] sm:$0xff]
        %v354 = vld [vmem:[#allocation5 + $0x188] sm:$0xff]
        %v355 = vld [vmem:[#allocation5 + $0x190] sm:$0xff]
        %v356 = vld [vmem:[#allocation5 + $0x198] sm:$0xff]
        %v357 = vld [vmem:[#allocation5 + $0x1a0] sm:$0xff]
        %v358 = vld [vmem:[#allocation5 + $0x1a8] sm:$0xff]
        %v359 = vld [vmem:[#allocation5 + $0x1b0] sm:$0xff]
        %v360 = vld [vmem:[#allocation5 + $0x1b8] sm:$0xff]
        %v361 = vld [vmem:[#allocation5 + $0x1c0] sm:$0xff]
        %v362 = vld [vmem:[#allocation5 + $0x1c8] sm:$0xff]
        %v363 = vld [vmem:[#allocation5 + $0x1d0] sm:$0xff]
        %v364 = vld [vmem:[#allocation5 + $0x1d8] sm:$0xff]
        %v365 = vld [vmem:[#allocation5 + $0x1e0] sm:$0xff]
        %v366 = vld [vmem:[#allocation5 + $0x1e8] sm:$0xff]
        %v367 = vld [vmem:[#allocation5 + $0x1f0] sm:$0xff]
        %v368 = vld [vmem:[#allocation5 + $0x1f8] sm:$0xff]
        %v369 = vld [vmem:[#allocation5 + $0x200] sm:$0xff]
        %v370 = vld [vmem:[#allocation5 + $0x208] sm:$0xff]
        %v371 = vld [vmem:[#allocation5 + $0x210] sm:$0xff]
        %v372 = vld [vmem:[#allocation5 + $0x218] sm:$0xff]
        %v373 = vld [vmem:[#allocation5 + $0x220] sm:$0xff]
        %v374 = vld [vmem:[#allocation5 + $0x228] sm:$0xff]
        %v375 = vld [vmem:[#allocation5 + $0x230] sm:$0xff]
        %v376 = vld [vmem:[#allocation5 + $0x238] sm:$0xff]
        %v377 = vld [vmem:[#allocation5 + $0x240] sm:$0xff]
        %v378 = vld [vmem:[#allocation5 + $0x248] sm:$0xff]
        %v379 = vld [vmem:[#allocation5 + $0x250] sm:$0xff]
        %v380 = vld [vmem:[#allocation5 + $0x258] sm:$0xff]
        %v381 = vld [vmem:[#allocation5 + $0x260] sm:$0xff]
        %v382 = vld [vmem:[#allocation5 + $0x268] sm:$0xff]
        %v383 = vld [vmem:[#allocation5 + $0x270] sm:$0xff]
        %v384 = vld [vmem:[#allocation5 + $0x278] sm:$0xff]
        %v385 = vld [vmem:[#allocation5 + $0x280] sm:$0xff]
        %v386 = vld [vmem:[#allocation5 + $0x288] sm:$0xff]
        %v387 = vld [vmem:[#allocation5 + $0x290] sm:$0xff]
        %v388 = vld [vmem:[#allocation5 + $0x298] sm:$0xff]
        %v389 = vld [vmem:[#allocation5 + $0x2a0] sm:$0xff]
        %v390 = vld [vmem:[#allocation5 + $0x2a8] sm:$0xff]
        %v391 = vld [vmem:[#allocation5 + $0x2b0] sm:$0xff]
        %v392 = vld [vmem:[#allocation5 + $0x2b8] sm:$0xff]
        %v393 = vld [vmem:[#allocation5 + $0x2c0] sm:$0xff]
        %v394 = vld [vmem:[#allocation5 + $0x2c8] sm:$0xff]
        %v395 = vld [vmem:[#allocation5 + $0x2d0] sm:$0xff]
        %v396 = vld [vmem:[#allocation5 + $0x2d8] sm:$0xff]
        %v397 = vld [vmem:[#allocation5 + $0x2e0] sm:$0xff]
        %v398 = vld [vmem:[#allocation5 + $0x2e8] sm:$0xff]
        %v399 = vld [vmem:[#allocation5 + $0x2f0] sm:$0xff]
        %v400 = vld [vmem:[#allocation5 + $0x2f8] sm:$0xff]
        %v401 = vld [vmem:[#allocation5 + $0x300] sm:$0xff]
        %v402 = vld [vmem:[#allocation5 + $0x308] sm:$0xff]
        %v403 = vld [vmem:[#allocation5 + $0x310] sm:$0xff]
        %v404 = vld [vmem:[#allocation5 + $0x318] sm:$0xff]
        %v405 = vld [vmem:[#allocation5 + $0x320] sm:$0xff]
        %v406 = vld [vmem:[#allocation5 + $0x328] sm:$0xff]
        %v407 = vld [vmem:[#allocation5 + $0x330] sm:$0xff]
        %v408 = vld [vmem:[#allocation5 + $0x338] sm:$0xff]
        %v409 = vld [vmem:[#allocation5 + $0x340] sm:$0xff]
        %v410 = vld [vmem:[#allocation5 + $0x348] sm:$0xff]
        %v411 = vld [vmem:[#allocation5 + $0x350] sm:$0xff]
        %v412 = vld [vmem:[#allocation5 + $0x358] sm:$0xff]
        %v413 = vld [vmem:[#allocation5 + $0x360] sm:$0xff]
        %v414 = vld [vmem:[#allocation5 + $0x368] sm:$0xff]
        %v415 = vld [vmem:[#allocation5 + $0x370] sm:$0xff]
        %v416 = vld [vmem:[#allocation5 + $0x378] sm:$0xff]
        %v417 = vld [vmem:[#allocation5 + $0x380] sm:$0xff]
        %v418 = vld [vmem:[#allocation5 + $0x388] sm:$0xff]
        %v419 = vld [vmem:[#allocation5 + $0x390] sm:$0xff]
        %v420 = vld [vmem:[#allocation5 + $0x398] sm:$0xff]
        %v421 = vld [vmem:[#allocation5 + $0x3a0] sm:$0xff]
        %v422 = vld [vmem:[#allocation5 + $0x3a8] sm:$0xff]
        %v423 = vld [vmem:[#allocation5 + $0x3b0] sm:$0xff]
        %v424 = vld [vmem:[#allocation5 + $0x3b8] sm:$0xff]
        %v425 = vld [vmem:[#allocation5 + $0x3c0] sm:$0xff]
        %v426 = vld [vmem:[#allocation5 + $0x3c8] sm:$0xff]
        %v427 = vld [vmem:[#allocation5 + $0x3d0] sm:$0xff]
        %v428 = vld [vmem:[#allocation5 + $0x3d8] sm:$0xff]
        %v429 = vld [vmem:[#allocation5 + $0x3e0] sm:$0xff]
        %v430 = vld [vmem:[#allocation5 + $0x3e8] sm:$0xff]
        %v431 = vld [vmem:[#allocation5 + $0x3f0] sm:$0xff]
        %v432 = vld [vmem:[#allocation5 + $0x3f8] sm:$0xff]
        %v433 = vld [vmem:[#allocation5 + $0x400] sm:$0xff]
        %v434 = vld [vmem:[#allocation5 + $0x408] sm:$0xff]
        %v435 = vld [vmem:[#allocation5 + $0x410] sm:$0xff]
        %v436 = vld [vmem:[#allocation5 + $0x418] sm:$0xff]
        %v437 = vld [vmem:[#allocation5 + $0x420] sm:$0xff]
        %v438 = vld [vmem:[#allocation5 + $0x428] sm:$0xff]
        %v439 = vld [vmem:[#allocation5 + $0x430] sm:$0xff]
        %v440 = vld [vmem:[#allocation5 + $0x438] sm:$0xff]
        %v441 = vld [vmem:[#allocation5 + $0x440] sm:$0xff]
        %v442 = vld [vmem:[#allocation5 + $0x448] sm:$0xff]
        %v443 = vld [vmem:[#allocation5 + $0x450] sm:$0xff]
        %v444 = vld [vmem:[#allocation5 + $0x458] sm:$0xff]
        %v445 = vld [vmem:[#allocation5 + $0x460] sm:$0xff]
        %v446 = vld [vmem:[#allocation5 + $0x468] sm:$0xff]
        %v447 = vld [vmem:[#allocation5 + $0x470] sm:$0xff]
        %v448 = vld [vmem:[#allocation5 + $0x478] sm:$0xff]
        %v449 = vld [vmem:[#allocation5 + $0x480] sm:$0xff]
        %v450 = vld [vmem:[#allocation5 + $0x488] sm:$0xff]
        %v451 = vld [vmem:[#allocation5 + $0x490] sm:$0xff]
        %v452 = vld [vmem:[#allocation5 + $0x498] sm:$0xff]
        %v453 = vld [vmem:[#allocation5 + $0x4a0] sm:$0xff]
        %v454 = vld [vmem:[#allocation5 + $0x4a8] sm:$0xff]
        %v455 = vld [vmem:[#allocation5 + $0x4b0] sm:$0xff]
        %v456 = vld [vmem:[#allocation5 + $0x4b8] sm:$0xff]
        %v457 = vld [vmem:[#allocation5 + $0x4c0] sm:$0xff]
        %v458 = vld [vmem:[#allocation5 + $0x4c8] sm:$0xff]
        %v459 = vld [vmem:[#allocation5 + $0x4d0] sm:$0xff]
        %v460 = vld [vmem:[#allocation5 + $0x4d8] sm:$0xff]
        %v461 = vld [vmem:[#allocation5 + $0x4e0] sm:$0xff]
        %v462 = vld [vmem:[#allocation5 + $0x4e8] sm:$0xff]
        %v463 = vld [vmem:[#allocation5 + $0x4f0] sm:$0xff]
        %v464 = vld [vmem:[#allocation5 + $0x4f8] sm:$0xff]
        %v465 = vld [vmem:[#allocation5 + $0x500] sm:$0xff]
        %v466 = vld [vmem:[#allocation5 + $0x508] sm:$0xff]
        %v467 = vld [vmem:[#allocation5 + $0x510] sm:$0xff]
        %v468 = vld [vmem:[#allocation5 + $0x518] sm:$0xff]
        %v469 = vld [vmem:[#allocation5 + $0x520] sm:$0xff]
        %v470 = vld [vmem:[#allocation5 + $0x528] sm:$0xff]
        %v471 = vld [vmem:[#allocation5 + $0x530] sm:$0xff]
        %v472 = vld [vmem:[#allocation5 + $0x538] sm:$0xff]
        %v473 = vld [vmem:[#allocation5 + $0x540] sm:$0xff]
        %v474 = vld [vmem:[#allocation5 + $0x548] sm:$0xff]
        %v475 = vld [vmem:[#allocation5 + $0x550] sm:$0xff]
        %v476 = vld [vmem:[#allocation5 + $0x558] sm:$0xff]
        %v477 = vld [vmem:[#allocation5 + $0x560] sm:$0xff]
        %v478 = vld [vmem:[#allocation5 + $0x568] sm:$0xff]
        %v479 = vld [vmem:[#allocation5 + $0x570] sm:$0xff]
        %v480 = vld [vmem:[#allocation5 + $0x578] sm:$0xff]
        %v481 = vld [vmem:[#allocation5 + $0x580] sm:$0xff]
        %v482 = vld [vmem:[#allocation5 + $0x588] sm:$0xff]
        %v483 = vld [vmem:[#allocation5 + $0x590] sm:$0xff]
        %v484 = vld [vmem:[#allocation5 + $0x598] sm:$0xff]
        %v485 = vld [vmem:[#allocation5 + $0x5a0] sm:$0xff]
        %v486 = vld [vmem:[#allocation5 + $0x5a8] sm:$0xff]
        %v487 = vld [vmem:[#allocation5 + $0x5b0] sm:$0xff]
        %v488 = vld [vmem:[#allocation5 + $0x5b8] sm:$0xff]
        %v489 = vld [vmem:[#allocation5 + $0x5c0] sm:$0xff]
        %v490 = vld [vmem:[#allocation5 + $0x5c8] sm:$0xff]
        %v491 = vld [vmem:[#allocation5 + $0x5d0] sm:$0xff]
        %v492 = vld [vmem:[#allocation5 + $0x5d8] sm:$0xff]
        %v493 = vld [vmem:[#allocation5 + $0x5e0] sm:$0xff]
        %v494 = vld [vmem:[#allocation5 + $0x5e8] sm:$0xff]
        %v495 = vld [vmem:[#allocation5 + $0x5f0] sm:$0xff]
        %v496 = vld [vmem:[#allocation5 + $0x5f8] sm:$0xff]
        %v497 = vld [vmem:[#allocation7] sm:$0xff]
        %v498 = vld [vmem:[#allocation7 + $0x8] sm:$0xf]
        %v501 = vperm.slane %v497, 0
        %v502 = vperm.slane %v497, 1
        %v503 = vperm.slane %v497, 2
        %v504 = vperm.slane %v497, 3
        %v505 = vperm.slane %v497, 4
        %v506 = vperm.slane %v497, 5
        %v507 = vperm.slane %v497, 6
        %v508 = vperm.slane %v497, 7
        %v509 = vperm.slane %v498, 0
        %v510 = vperm.slane %v498, 1
        %v511 = vperm.slane %v498, 2
        %v512 = vperm.slane %v498, 3
        %525 = vmatpush.msra.mxu0 %v485
        %526 = vmatpush.msra.mxu0 %v473
        %527 = vmatpush.msra.mxu0 %v461
        %528 = vmatpush.msra.mxu0 %v449
        %529 = vmatpush.msra.mxu0 %v437
        %530 = vmatpush.msra.mxu0 %v425
        %531 = vmatpush.msra.mxu0 %v413
        %532 = vmatpush.msra.mxu0 %v401
        %533 = vmatpush.msra.mxu0 %v389
        %534 = vmatpush.msra.mxu0 %v377
        %535 = vmatpush.msra.mxu0 %v365
        %536 = vmatpush.msra.mxu0 %v353
        %537 = vmatpush.msra.mxu0 %v341
        %538 = vmatpush.msra.mxu0 %v329
        %539 = vmatpush.msra.mxu0 %v317
        %540 = vmatpush.msra.mxu0 %v305
        %541 = vmatmul.f32.gmra.mxu0 %v304
        %v542 = vpop.f32.mrf.mxu0
        %v543 = vadd.f32 %v501, %v542
        %544 = vdwg.mxu0
        %545 = vmatpush.msra.mxu0 %v486
        %546 = vmatpush.msra.mxu0 %v474
        %547 = vmatpush.msra.mxu0 %v462
        %548 = vmatpush.msra.mxu0 %v450
        %549 = vmatpush.msra.mxu0 %v438
        %550 = vmatpush.msra.mxu0 %v426
        %551 = vmatpush.msra.mxu0 %v414
        %552 = vmatpush.msra.mxu0 %v402
        %553 = vmatpush.msra.mxu0 %v390
        %554 = vmatpush.msra.mxu0 %v378
        %555 = vmatpush.msra.mxu0 %v366
        %556 = vmatpush.msra.mxu0 %v354
        %557 = vmatpush.msra.mxu0 %v342
        %558 = vmatpush.msra.mxu0 %v330
        %559 = vmatpush.msra.mxu0 %v318
        %560 = vmatpush.msra.mxu0 %v306
        %561 = vmatmul.f32.gmra.mxu0 %v304
        %v562 = vpop.f32.mrf.mxu0
        %v563 = vadd.f32 %v502, %v562
        %564 = vdwg.mxu0
        %565 = vmatpush.msra.mxu0 %v487
        %566 = vmatpush.msra.mxu0 %v475
        %567 = vmatpush.msra.mxu0 %v463
        %568 = vmatpush.msra.mxu0 %v451
        %569 = vmatpush.msra.mxu0 %v439
        %570 = vmatpush.msra.mxu0 %v427
        %571 = vmatpush.msra.mxu0 %v415
        %572 = vmatpush.msra.mxu0 %v403
        %573 = vmatpush.msra.mxu0 %v391
        %574 = vmatpush.msra.mxu0 %v379
        %575 = vmatpush.msra.mxu0 %v367
        %576 = vmatpush.msra.mxu0 %v355
        %577 = vmatpush.msra.mxu0 %v343
        %578 = vmatpush.msra.mxu0 %v331
        %579 = vmatpush.msra.mxu0 %v319
        %580 = vmatpush.msra.mxu0 %v307
        %581 = vmatmul.f32.gmra.mxu0 %v304
        %v582 = vpop.f32.mrf.mxu0
        %v583 = vadd.f32 %v503, %v582
        %584 = vdwg.mxu0
        %585 = vmatpush.msra.mxu0 %v488
        %586 = vmatpush.msra.mxu0 %v476
        %587 = vmatpush.msra.mxu0 %v464
        %588 = vmatpush.msra.mxu0 %v452
        %589 = vmatpush.msra.mxu0 %v440
        %590 = vmatpush.msra.mxu0 %v428
        %591 = vmatpush.msra.mxu0 %v416
        %592 = vmatpush.msra.mxu0 %v404
        %593 = vmatpush.msra.mxu0 %v392
        %594 = vmatpush.msra.mxu0 %v380
        %595 = vmatpush.msra.mxu0 %v368
        %596 = vmatpush.msra.mxu0 %v356
        %597 = vmatpush.msra.mxu0 %v344
        %598 = vmatpush.msra.mxu0 %v332
        %599 = vmatpush.msra.mxu0 %v320
        %600 = vmatpush.msra.mxu0 %v308
        %601 = vmatmul.f32.gmra.mxu0 %v304
        %v602 = vpop.f32.mrf.mxu0
        %v603 = vadd.f32 %v504, %v602
        %604 = vdwg.mxu0
        %605 = vmatpush.msra.mxu0 %v489
        %606 = vmatpush.msra.mxu0 %v477
        %607 = vmatpush.msra.mxu0 %v465
        %608 = vmatpush.msra.mxu0 %v453
        %609 = vmatpush.msra.mxu0 %v441
        %610 = vmatpush.msra.mxu0 %v429
        %611 = vmatpush.msra.mxu0 %v417
        %612 = vmatpush.msra.mxu0 %v405
        %613 = vmatpush.msra.mxu0 %v393
        %614 = vmatpush.msra.mxu0 %v381
        %615 = vmatpush.msra.mxu0 %v369
        %616 = vmatpush.msra.mxu0 %v357
        %617 = vmatpush.msra.mxu0 %v345
        %618 = vmatpush.msra.mxu0 %v333
        %619 = vmatpush.msra.mxu0 %v321
        %620 = vmatpush.msra.mxu0 %v309
        %621 = vmatmul.f32.gmra.mxu0 %v304
        %v622 = vpop.f32.mrf.mxu0
        %v623 = vadd.f32 %v505, %v622
        %624 = vdwg.mxu0
        %625 = vmatpush.msra.mxu0 %v490
        %626 = vmatpush.msra.mxu0 %v478
        %627 = vmatpush.msra.mxu0 %v466
        %628 = vmatpush.msra.mxu0 %v454
        %629 = vmatpush.msra.mxu0 %v442
        %630 = vmatpush.msra.mxu0 %v430
        %631 = vmatpush.msra.mxu0 %v418
        %632 = vmatpush.msra.mxu0 %v406
        %633 = vmatpush.msra.mxu0 %v394
        %634 = vmatpush.msra.mxu0 %v382
        %635 = vmatpush.msra.mxu0 %v370
        %636 = vmatpush.msra.mxu0 %v358
        %637 = vmatpush.msra.mxu0 %v346
        %638 = vmatpush.msra.mxu0 %v334
        %639 = vmatpush.msra.mxu0 %v322
        %640 = vmatpush.msra.mxu0 %v310
        %641 = vmatmul.f32.gmra.mxu0 %v304
        %v642 = vpop.f32.mrf.mxu0
        %v643 = vadd.f32 %v506, %v642
        %644 = vdwg.mxu0
        %645 = vmatpush.msra.mxu0 %v491
        %646 = vmatpush.msra.mxu0 %v479
        %647 = vmatpush.msra.mxu0 %v467
        %648 = vmatpush.msra.mxu0 %v455
        %649 = vmatpush.msra.mxu0 %v443
        %650 = vmatpush.msra.mxu0 %v431
        %651 = vmatpush.msra.mxu0 %v419
        %652 = vmatpush.msra.mxu0 %v407
        %653 = vmatpush.msra.mxu0 %v395
        %654 = vmatpush.msra.mxu0 %v383
        %655 = vmatpush.msra.mxu0 %v371
        %656 = vmatpush.msra.mxu0 %v359
        %657 = vmatpush.msra.mxu0 %v347
        %658 = vmatpush.msra.mxu0 %v335
        %659 = vmatpush.msra.mxu0 %v323
        %660 = vmatpush.msra.mxu0 %v311
        %661 = vmatmul.f32.gmra.mxu0 %v304
        %v662 = vpop.f32.mrf.mxu0
        %v663 = vadd.f32 %v507, %v662
        %664 = vdwg.mxu0
        %665 = vmatpush.msra.mxu0 %v492
        %666 = vmatpush.msra.mxu0 %v480
        %667 = vmatpush.msra.mxu0 %v468
        %668 = vmatpush.msra.mxu0 %v456
        %669 = vmatpush.msra.mxu0 %v444
        %670 = vmatpush.msra.mxu0 %v432
        %671 = vmatpush.msra.mxu0 %v420
        %672 = vmatpush.msra.mxu0 %v408
        %673 = vmatpush.msra.mxu0 %v396
        %674 = vmatpush.msra.mxu0 %v384
        %675 = vmatpush.msra.mxu0 %v372
        %676 = vmatpush.msra.mxu0 %v360
        %677 = vmatpush.msra.mxu0 %v348
        %678 = vmatpush.msra.mxu0 %v336
        %679 = vmatpush.msra.mxu0 %v324
        %680 = vmatpush.msra.mxu0 %v312
        %681 = vmatmul.f32.gmra.mxu0 %v304
        %v682 = vpop.f32.mrf.mxu0
        %v683 = vadd.f32 %v508, %v682
        %684 = vdwg.mxu0
        %685 = vmatpush.msra.mxu0 %v493
        %686 = vmatpush.msra.mxu0 %v481
        %687 = vmatpush.msra.mxu0 %v469
        %688 = vmatpush.msra.mxu0 %v457
        %689 = vmatpush.msra.mxu0 %v445
        %690 = vmatpush.msra.mxu0 %v433
        %691 = vmatpush.msra.mxu0 %v421
        %692 = vmatpush.msra.mxu0 %v409
        %693 = vmatpush.msra.mxu0 %v397
        %694 = vmatpush.msra.mxu0 %v385
        %695 = vmatpush.msra.mxu0 %v373
        %696 = vmatpush.msra.mxu0 %v361
        %697 = vmatpush.msra.mxu0 %v349
        %698 = vmatpush.msra.mxu0 %v337
        %699 = vmatpush.msra.mxu0 %v325
        %700 = vmatpush.msra.mxu0 %v313
        %701 = vmatmul.f32.gmra.mxu0 %v304
        %v702 = vpop.f32.mrf.mxu0
        %v703 = vadd.f32 %v509, %v702
        %704 = vdwg.mxu0
        %705 = vmatpush.msra.mxu0 %v494
        %706 = vmatpush.msra.mxu0 %v482
        %707 = vmatpush.msra.mxu0 %v470
        %708 = vmatpush.msra.mxu0 %v458
        %709 = vmatpush.msra.mxu0 %v446
        %710 = vmatpush.msra.mxu0 %v434
        %711 = vmatpush.msra.mxu0 %v422
        %712 = vmatpush.msra.mxu0 %v410
        %713 = vmatpush.msra.mxu0 %v398
        %714 = vmatpush.msra.mxu0 %v386
        %715 = vmatpush.msra.mxu0 %v374
        %716 = vmatpush.msra.mxu0 %v362
        %717 = vmatpush.msra.mxu0 %v350
        %718 = vmatpush.msra.mxu0 %v338
        %719 = vmatpush.msra.mxu0 %v326
        %720 = vmatpush.msra.mxu0 %v314
        %721 = vmatmul.f32.gmra.mxu0 %v304
        %v722 = vpop.f32.mrf.mxu0
        %v723 = vadd.f32 %v510, %v722
        %724 = vdwg.mxu0
        %725 = vmatpush.msra.mxu0 %v495
        %726 = vmatpush.msra.mxu0 %v483
        %727 = vmatpush.msra.mxu0 %v471
        %728 = vmatpush.msra.mxu0 %v459
        %729 = vmatpush.msra.mxu0 %v447
        %730 = vmatpush.msra.mxu0 %v435
        %731 = vmatpush.msra.mxu0 %v423
        %732 = vmatpush.msra.mxu0 %v411
        %733 = vmatpush.msra.mxu0 %v399
        %734 = vmatpush.msra.mxu0 %v387
        %735 = vmatpush.msra.mxu0 %v375
        %736 = vmatpush.msra.mxu0 %v363
        %737 = vmatpush.msra.mxu0 %v351
        %738 = vmatpush.msra.mxu0 %v339
        %739 = vmatpush.msra.mxu0 %v327
        %740 = vmatpush.msra.mxu0 %v315
        %741 = vmatmul.f32.gmra.mxu0 %v304
        %v742 = vpop.f32.mrf.mxu0
        %v743 = vadd.f32 %v511, %v742
        %744 = vdwg.mxu0
        %745 = vmatpush.msra.mxu0 %v496
        %746 = vmatpush.msra.mxu0 %v484
        %747 = vmatpush.msra.mxu0 %v472
        %748 = vmatpush.msra.mxu0 %v460
        %749 = vmatpush.msra.mxu0 %v448
        %750 = vmatpush.msra.mxu0 %v436
        %751 = vmatpush.msra.mxu0 %v424
        %752 = vmatpush.msra.mxu0 %v412
        %753 = vmatpush.msra.mxu0 %v400
        %754 = vmatpush.msra.mxu0 %v388
        %755 = vmatpush.msra.mxu0 %v376
        %756 = vmatpush.msra.mxu0 %v364
        %757 = vmatpush.msra.mxu0 %v352
        %758 = vmatpush.msra.mxu0 %v340
        %759 = vmatpush.msra.mxu0 %v328
        %760 = vmatpush.msra.mxu0 %v316
        %761 = vmatmul.f32.gmra.mxu0 %v304
        %v762 = vpop.f32.mrf.mxu0
        %v763 = vadd.f32 %v512, %v762
        %764 = vdwg.mxu0
        %v765 = vmax.f32 %v543, 0.0
        %v766 = vmax.f32 %v563, 0.0
        %v767 = vmax.f32 %v583, 0.0
        %v768 = vmax.f32 %v603, 0.0
        %v769 = vmax.f32 %v623, 0.0
        %v770 = vmax.f32 %v643, 0.0
        %v771 = vmax.f32 %v663, 0.0
        %v772 = vmax.f32 %v683, 0.0
        %v773 = vmax.f32 %v703, 0.0
        %v774 = vmax.f32 %v723, 0.0
        %v775 = vmax.f32 %v743, 0.0
        %v776 = vmax.f32 %v763, 0.0
        %v777 = vld [vmem:[#allocation8] sm:$0xff]
        %v778 = vld [vmem:[#allocation8 + $0x8] sm:$0xff]
        %v779 = vld [vmem:[#allocation8 + $0x10] sm:$0xff]
        %v780 = vld [vmem:[#allocation8 + $0x18] sm:$0xff]
        %v781 = vld [vmem:[#allocation8 + $0x20] sm:$0xff]
        %v782 = vld [vmem:[#allocation8 + $0x28] sm:$0xff]
        %v783 = vld [vmem:[#allocation8 + $0x30] sm:$0xff]
        %v784 = vld [vmem:[#allocation8 + $0x38] sm:$0xff]
        %v785 = vld [vmem:[#allocation8 + $0x40] sm:$0xff]
        %v786 = vld [vmem:[#allocation8 + $0x48] sm:$0xff]
        %v787 = vld [vmem:[#allocation8 + $0x50] sm:$0xff]
        %v788 = vld [vmem:[#allocation8 + $0x58] sm:$0xff]
        %v789 = vld [vmem:[#allocation8 + $0x60] sm:$0xff]
        %v790 = vld [vmem:[#allocation8 + $0x68] sm:$0xff]
        %v791 = vld [vmem:[#allocation8 + $0x70] sm:$0xff]
        %v792 = vld [vmem:[#allocation8 + $0x78] sm:$0xff]
        %v793 = vld [vmem:[#allocation8 + $0x80] sm:$0xff]
        %v794 = vld [vmem:[#allocation8 + $0x88] sm:$0xff]
        %v795 = vld [vmem:[#allocation8 + $0x90] sm:$0xff]
        %v796 = vld [vmem:[#allocation8 + $0x98] sm:$0xff]
        %v797 = vld [vmem:[#allocation8 + $0xa0] sm:$0xff]
        %v798 = vld [vmem:[#allocation8 + $0xa8] sm:$0xff]
        %v799 = vld [vmem:[#allocation8 + $0xb0] sm:$0xff]
        %v800 = vld [vmem:[#allocation8 + $0xb8] sm:$0xff]
        %v801 = vld [vmem:[#allocation8 + $0xc0] sm:$0xff]
        %v802 = vld [vmem:[#allocation8 + $0xc8] sm:$0xff]
        %v803 = vld [vmem:[#allocation8 + $0xd0] sm:$0xff]
        %v804 = vld [vmem:[#allocation8 + $0xd8] sm:$0xff]
        %v805 = vld [vmem:[#allocation8 + $0xe0] sm:$0xff]
        %v806 = vld [vmem:[#allocation8 + $0xe8] sm:$0xff]
        %v807 = vld [vmem:[#allocation8 + $0xf0] sm:$0xff]
        %v808 = vld [vmem:[#allocation8 + $0xf8] sm:$0xff]
        %v809 = vld [vmem:[#allocation8 + $0x100] sm:$0xff]
        %v810 = vld [vmem:[#allocation8 + $0x108] sm:$0xff]
        %v811 = vld [vmem:[#allocation8 + $0x110] sm:$0xff]
        %v812 = vld [vmem:[#allocation8 + $0x118] sm:$0xff]
        %v813 = vld [vmem:[#allocation8 + $0x120] sm:$0xff]
        %v814 = vld [vmem:[#allocation8 + $0x128] sm:$0xff]
        %v815 = vld [vmem:[#allocation8 + $0x130] sm:$0xff]
        %v816 = vld [vmem:[#allocation8 + $0x138] sm:$0xff]
        %v817 = vld [vmem:[#allocation8 + $0x140] sm:$0xff]
        %v818 = vld [vmem:[#allocation8 + $0x148] sm:$0xff]
        %v819 = vld [vmem:[#allocation8 + $0x150] sm:$0xff]
        %v820 = vld [vmem:[#allocation8 + $0x158] sm:$0xff]
        %v821 = vld [vmem:[#allocation8 + $0x160] sm:$0xff]
        %v822 = vld [vmem:[#allocation8 + $0x168] sm:$0xff]
        %v823 = vld [vmem:[#allocation8 + $0x170] sm:$0xff]
        %v824 = vld [vmem:[#allocation8 + $0x178] sm:$0xff]
        %v825 = vld [vmem:[#allocation8 + $0x180] sm:$0xff]
        %v826 = vld [vmem:[#allocation8 + $0x188] sm:$0xff]
        %v827 = vld [vmem:[#allocation8 + $0x190] sm:$0xff]
        %v828 = vld [vmem:[#allocation8 + $0x198] sm:$0xff]
        %v829 = vld [vmem:[#allocation8 + $0x1a0] sm:$0xff]
        %v830 = vld [vmem:[#allocation8 + $0x1a8] sm:$0xff]
        %v831 = vld [vmem:[#allocation8 + $0x1b0] sm:$0xff]
        %v832 = vld [vmem:[#allocation8 + $0x1b8] sm:$0xff]
        %v833 = vld [vmem:[#allocation8 + $0x1c0] sm:$0xff]
        %v834 = vld [vmem:[#allocation8 + $0x1c8] sm:$0xff]
        %v835 = vld [vmem:[#allocation8 + $0x1d0] sm:$0xff]
        %v836 = vld [vmem:[#allocation8 + $0x1d8] sm:$0xff]
        %v837 = vld [vmem:[#allocation8 + $0x1e0] sm:$0xff]
        %v838 = vld [vmem:[#allocation8 + $0x1e8] sm:$0xff]
        %v839 = vld [vmem:[#allocation8 + $0x1f0] sm:$0xff]
        %v840 = vld [vmem:[#allocation8 + $0x1f8] sm:$0xff]
        %v841 = vld [vmem:[#allocation8 + $0x200] sm:$0xff]
        %v842 = vld [vmem:[#allocation8 + $0x208] sm:$0xff]
        %v843 = vld [vmem:[#allocation8 + $0x210] sm:$0xff]
        %v844 = vld [vmem:[#allocation8 + $0x218] sm:$0xff]
        %v845 = vld [vmem:[#allocation8 + $0x220] sm:$0xff]
        %v846 = vld [vmem:[#allocation8 + $0x228] sm:$0xff]
        %v847 = vld [vmem:[#allocation8 + $0x230] sm:$0xff]
        %v848 = vld [vmem:[#allocation8 + $0x238] sm:$0xff]
        %v849 = vld [vmem:[#allocation8 + $0x240] sm:$0xff]
        %v850 = vld [vmem:[#allocation8 + $0x248] sm:$0xff]
        %v851 = vld [vmem:[#allocation8 + $0x250] sm:$0xff]
        %v852 = vld [vmem:[#allocation8 + $0x258] sm:$0xff]
        %v853 = vld [vmem:[#allocation8 + $0x260] sm:$0xff]
        %v854 = vld [vmem:[#allocation8 + $0x268] sm:$0xff]
        %v855 = vld [vmem:[#allocation8 + $0x270] sm:$0xff]
        %v856 = vld [vmem:[#allocation8 + $0x278] sm:$0xff]
        %v857 = vld [vmem:[#allocation8 + $0x280] sm:$0xff]
        %v858 = vld [vmem:[#allocation8 + $0x288] sm:$0xff]
        %v859 = vld [vmem:[#allocation8 + $0x290] sm:$0xff]
        %v860 = vld [vmem:[#allocation8 + $0x298] sm:$0xff]
        %v861 = vld [vmem:[#allocation8 + $0x2a0] sm:$0xff]
        %v862 = vld [vmem:[#allocation8 + $0x2a8] sm:$0xff]
        %v863 = vld [vmem:[#allocation8 + $0x2b0] sm:$0xff]
        %v864 = vld [vmem:[#allocation8 + $0x2b8] sm:$0xff]
        %v865 = vld [vmem:[#allocation8 + $0x2c0] sm:$0xff]
        %v866 = vld [vmem:[#allocation8 + $0x2c8] sm:$0xff]
        %v867 = vld [vmem:[#allocation8 + $0x2d0] sm:$0xff]
        %v868 = vld [vmem:[#allocation8 + $0x2d8] sm:$0xff]
        %v869 = vld [vmem:[#allocation8 + $0x2e0] sm:$0xff]
        %v870 = vld [vmem:[#allocation8 + $0x2e8] sm:$0xff]
        %v871 = vld [vmem:[#allocation8 + $0x2f0] sm:$0xff]
        %v872 = vld [vmem:[#allocation8 + $0x2f8] sm:$0xff]
        %v873 = vld [vmem:[#allocation8 + $0x300] sm:$0xff]
        %v874 = vld [vmem:[#allocation8 + $0x308] sm:$0xff]
        %v875 = vld [vmem:[#allocation8 + $0x310] sm:$0xff]
        %v876 = vld [vmem:[#allocation8 + $0x318] sm:$0xff]
        %v877 = vld [vmem:[#allocation8 + $0x320] sm:$0xff]
        %v878 = vld [vmem:[#allocation8 + $0x328] sm:$0xff]
        %v879 = vld [vmem:[#allocation8 + $0x330] sm:$0xff]
        %v880 = vld [vmem:[#allocation8 + $0x338] sm:$0xff]
        %v881 = vld [vmem:[#allocation8 + $0x340] sm:$0xff]
        %v882 = vld [vmem:[#allocation8 + $0x348] sm:$0xff]
        %v883 = vld [vmem:[#allocation8 + $0x350] sm:$0xff]
        %v884 = vld [vmem:[#allocation8 + $0x358] sm:$0xff]
        %v885 = vld [vmem:[#allocation8 + $0x360] sm:$0xff]
        %v886 = vld [vmem:[#allocation8 + $0x368] sm:$0xff]
        %v887 = vld [vmem:[#allocation8 + $0x370] sm:$0xff]
        %v888 = vld [vmem:[#allocation8 + $0x378] sm:$0xff]
        %v889 = vld [vmem:[#allocation8 + $0x380] sm:$0xff]
        %v890 = vld [vmem:[#allocation8 + $0x388] sm:$0xff]
        %v891 = vld [vmem:[#allocation8 + $0x390] sm:$0xff]
        %v892 = vld [vmem:[#allocation8 + $0x398] sm:$0xff]
        %v893 = vld [vmem:[#allocation8 + $0x3a0] sm:$0xff]
        %v894 = vld [vmem:[#allocation8 + $0x3a8] sm:$0xff]
        %v895 = vld [vmem:[#allocation8 + $0x3b0] sm:$0xff]
        %v896 = vld [vmem:[#allocation8 + $0x3b8] sm:$0xff]
        %v897 = vld [vmem:[#allocation8 + $0x3c0] sm:$0xff]
        %v898 = vld [vmem:[#allocation8 + $0x3c8] sm:$0xff]
        %v899 = vld [vmem:[#allocation8 + $0x3d0] sm:$0xff]
        %v900 = vld [vmem:[#allocation8 + $0x3d8] sm:$0xff]
        %v901 = vld [vmem:[#allocation8 + $0x3e0] sm:$0xff]
        %v902 = vld [vmem:[#allocation8 + $0x3e8] sm:$0xff]
        %v903 = vld [vmem:[#allocation8 + $0x3f0] sm:$0xff]
        %v904 = vld [vmem:[#allocation8 + $0x3f8] sm:$0xff]
        %v905 = vld [vmem:[#allocation8 + $0x400] sm:$0xff]
        %v906 = vld [vmem:[#allocation8 + $0x408] sm:$0xff]
        %v907 = vld [vmem:[#allocation8 + $0x410] sm:$0xff]
        %v908 = vld [vmem:[#allocation8 + $0x418] sm:$0xff]
        %v909 = vld [vmem:[#allocation8 + $0x420] sm:$0xff]
        %v910 = vld [vmem:[#allocation8 + $0x428] sm:$0xff]
        %v911 = vld [vmem:[#allocation8 + $0x430] sm:$0xff]
        %v912 = vld [vmem:[#allocation8 + $0x438] sm:$0xff]
        %v913 = vld [vmem:[#allocation8 + $0x440] sm:$0xff]
        %v914 = vld [vmem:[#allocation8 + $0x448] sm:$0xff]
        %v915 = vld [vmem:[#allocation8 + $0x450] sm:$0xff]
        %v916 = vld [vmem:[#allocation8 + $0x458] sm:$0xff]
        %v917 = vld [vmem:[#allocation8 + $0x460] sm:$0xff]
        %v918 = vld [vmem:[#allocation8 + $0x468] sm:$0xff]
        %v919 = vld [vmem:[#allocation8 + $0x470] sm:$0xff]
        %v920 = vld [vmem:[#allocation8 + $0x478] sm:$0xff]
        %v921 = vld [vmem:[#allocation8 + $0x480] sm:$0xff]
        %v922 = vld [vmem:[#allocation8 + $0x488] sm:$0xff]
        %v923 = vld [vmem:[#allocation8 + $0x490] sm:$0xff]
        %v924 = vld [vmem:[#allocation8 + $0x498] sm:$0xff]
        %v925 = vld [vmem:[#allocation8 + $0x4a0] sm:$0xff]
        %v926 = vld [vmem:[#allocation8 + $0x4a8] sm:$0xff]
        %v927 = vld [vmem:[#allocation8 + $0x4b0] sm:$0xff]
        %v928 = vld [vmem:[#allocation8 + $0x4b8] sm:$0xff]
        %v929 = vld [vmem:[#allocation8 + $0x4c0] sm:$0xff]
        %v930 = vld [vmem:[#allocation8 + $0x4c8] sm:$0xff]
        %v931 = vld [vmem:[#allocation8 + $0x4d0] sm:$0xff]
        %v932 = vld [vmem:[#allocation8 + $0x4d8] sm:$0xff]
        %v933 = vld [vmem:[#allocation8 + $0x4e0] sm:$0xff]
        %v934 = vld [vmem:[#allocation8 + $0x4e8] sm:$0xff]
        %v935 = vld [vmem:[#allocation8 + $0x4f0] sm:$0xff]
        %v936 = vld [vmem:[#allocation8 + $0x4f8] sm:$0xff]
        %v937 = vld [vmem:[#allocation8 + $0x500] sm:$0xff]
        %v938 = vld [vmem:[#allocation8 + $0x508] sm:$0xff]
        %v939 = vld [vmem:[#allocation8 + $0x510] sm:$0xff]
        %v940 = vld [vmem:[#allocation8 + $0x518] sm:$0xff]
        %v941 = vld [vmem:[#allocation8 + $0x520] sm:$0xff]
        %v942 = vld [vmem:[#allocation8 + $0x528] sm:$0xff]
        %v943 = vld [vmem:[#allocation8 + $0x530] sm:$0xff]
        %v944 = vld [vmem:[#allocation8 + $0x538] sm:$0xff]
        %v945 = vld [vmem:[#allocation8 + $0x540] sm:$0xff]
        %v946 = vld [vmem:[#allocation8 + $0x548] sm:$0xff]
        %v947 = vld [vmem:[#allocation8 + $0x550] sm:$0xff]
        %v948 = vld [vmem:[#allocation8 + $0x558] sm:$0xff]
        %v949 = vld [vmem:[#allocation8 + $0x560] sm:$0xff]
        %v950 = vld [vmem:[#allocation8 + $0x568] sm:$0xff]
        %v951 = vld [vmem:[#allocation8 + $0x570] sm:$0xff]
        %v952 = vld [vmem:[#allocation8 + $0x578] sm:$0xff]
        %v953 = vld [vmem:[#allocation8 + $0x580] sm:$0xff]
        %v954 = vld [vmem:[#allocation8 + $0x588] sm:$0xff]
        %v955 = vld [vmem:[#allocation8 + $0x590] sm:$0xff]
        %v956 = vld [vmem:[#allocation8 + $0x598] sm:$0xff]
        %v957 = vld [vmem:[#allocation8 + $0x5a0] sm:$0xff]
        %v958 = vld [vmem:[#allocation8 + $0x5a8] sm:$0xff]
        %v959 = vld [vmem:[#allocation8 + $0x5b0] sm:$0xff]
        %v960 = vld [vmem:[#allocation8 + $0x5b8] sm:$0xff]
        %v961 = vld [vmem:[#allocation8 + $0x5c0] sm:$0xff]
        %v962 = vld [vmem:[#allocation8 + $0x5c8] sm:$0xff]
        %v963 = vld [vmem:[#allocation8 + $0x5d0] sm:$0xff]
        %v964 = vld [vmem:[#allocation8 + $0x5d8] sm:$0xff]
        %v965 = vld [vmem:[#allocation8 + $0x5e0] sm:$0xff]
        %v966 = vld [vmem:[#allocation8 + $0x5e8] sm:$0xff]
        %v967 = vld [vmem:[#allocation8 + $0x5f0] sm:$0xff]
        %v968 = vld [vmem:[#allocation8 + $0x5f8] sm:$0xff]
        %v969 = vld [vmem:[#allocation8 + $0x600] sm:$0xff]
        %v970 = vld [vmem:[#allocation8 + $0x608] sm:$0xff]
        %v971 = vld [vmem:[#allocation8 + $0x610] sm:$0xff]
        %v972 = vld [vmem:[#allocation8 + $0x618] sm:$0xff]
        %v973 = vld [vmem:[#allocation8 + $0x620] sm:$0xff]
        %v974 = vld [vmem:[#allocation8 + $0x628] sm:$0xff]
        %v975 = vld [vmem:[#allocation8 + $0x630] sm:$0xff]
        %v976 = vld [vmem:[#allocation8 + $0x638] sm:$0xff]
        %v977 = vld [vmem:[#allocation8 + $0x640] sm:$0xff]
        %v978 = vld [vmem:[#allocation8 + $0x648] sm:$0xff]
        %v979 = vld [vmem:[#allocation8 + $0x650] sm:$0xff]
        %v980 = vld [vmem:[#allocation8 + $0x658] sm:$0xff]
        %v981 = vld [vmem:[#allocation8 + $0x660] sm:$0xff]
        %v982 = vld [vmem:[#allocation8 + $0x668] sm:$0xff]
        %v983 = vld [vmem:[#allocation8 + $0x670] sm:$0xff]
        %v984 = vld [vmem:[#allocation8 + $0x678] sm:$0xff]
        %v985 = vld [vmem:[#allocation8 + $0x680] sm:$0xff]
        %v986 = vld [vmem:[#allocation8 + $0x688] sm:$0xff]
        %v987 = vld [vmem:[#allocation8 + $0x690] sm:$0xff]
        %v988 = vld [vmem:[#allocation8 + $0x698] sm:$0xff]
        %v989 = vld [vmem:[#allocation8 + $0x6a0] sm:$0xff]
        %v990 = vld [vmem:[#allocation8 + $0x6a8] sm:$0xff]
        %v991 = vld [vmem:[#allocation8 + $0x6b0] sm:$0xff]
        %v992 = vld [vmem:[#allocation8 + $0x6b8] sm:$0xff]
        %v993 = vld [vmem:[#allocation8 + $0x6c0] sm:$0xff]
        %v994 = vld [vmem:[#allocation8 + $0x6c8] sm:$0xff]
        %v995 = vld [vmem:[#allocation8 + $0x6d0] sm:$0xff]
        %v996 = vld [vmem:[#allocation8 + $0x6d8] sm:$0xff]
        %v997 = vld [vmem:[#allocation8 + $0x6e0] sm:$0xff]
        %v998 = vld [vmem:[#allocation8 + $0x6e8] sm:$0xff]
        %v999 = vld [vmem:[#allocation8 + $0x6f0] sm:$0xff]
        %v1000 = vld [vmem:[#allocation8 + $0x6f8] sm:$0xff]
        %v1001 = vld [vmem:[#allocation8 + $0x700] sm:$0xff]
        %v1002 = vld [vmem:[#allocation8 + $0x708] sm:$0xff]
        %v1003 = vld [vmem:[#allocation8 + $0x710] sm:$0xff]
        %v1004 = vld [vmem:[#allocation8 + $0x718] sm:$0xff]
        %v1005 = vld [vmem:[#allocation8 + $0x720] sm:$0xff]
        %v1006 = vld [vmem:[#allocation8 + $0x728] sm:$0xff]
        %v1007 = vld [vmem:[#allocation8 + $0x730] sm:$0xff]
        %v1008 = vld [vmem:[#allocation8 + $0x738] sm:$0xff]
        %v1009 = vld [vmem:[#allocation8 + $0x740] sm:$0xff]
        %v1010 = vld [vmem:[#allocation8 + $0x748] sm:$0xff]
        %v1011 = vld [vmem:[#allocation8 + $0x750] sm:$0xff]
        %v1012 = vld [vmem:[#allocation8 + $0x758] sm:$0xff]
        %v1013 = vld [vmem:[#allocation8 + $0x760] sm:$0xff]
        %v1014 = vld [vmem:[#allocation8 + $0x768] sm:$0xff]
        %v1015 = vld [vmem:[#allocation8 + $0x770] sm:$0xff]
        %v1016 = vld [vmem:[#allocation8 + $0x778] sm:$0xff]
        %v1017 = vld [vmem:[#allocation8 + $0x780] sm:$0xff]
        %v1018 = vld [vmem:[#allocation8 + $0x788] sm:$0xff]
        %v1019 = vld [vmem:[#allocation8 + $0x790] sm:$0xff]
        %v1020 = vld [vmem:[#allocation8 + $0x798] sm:$0xff]
        %v1021 = vld [vmem:[#allocation8 + $0x7a0] sm:$0xff]
        %v1022 = vld [vmem:[#allocation8 + $0x7a8] sm:$0xff]
        %v1023 = vld [vmem:[#allocation8 + $0x7b0] sm:$0xff]
        %v1024 = vld [vmem:[#allocation8 + $0x7b8] sm:$0xff]
        %v1025 = vld [vmem:[#allocation8 + $0x7c0] sm:$0xff]
        %v1026 = vld [vmem:[#allocation8 + $0x7c8] sm:$0xff]
        %v1027 = vld [vmem:[#allocation8 + $0x7d0] sm:$0xff]
        %v1028 = vld [vmem:[#allocation8 + $0x7d8] sm:$0xff]
        %v1029 = vld [vmem:[#allocation8 + $0x7e0] sm:$0xff]
        %v1030 = vld [vmem:[#allocation8 + $0x7e8] sm:$0xff]
        %v1031 = vld [vmem:[#allocation8 + $0x7f0] sm:$0xff]
        %v1032 = vld [vmem:[#allocation8 + $0x7f8] sm:$0xff]
        %v1033 = vld [vmem:[#allocation8 + $0x800] sm:$0xff]
        %v1034 = vld [vmem:[#allocation8 + $0x808] sm:$0xff]
        %v1035 = vld [vmem:[#allocation8 + $0x810] sm:$0xff]
        %v1036 = vld [vmem:[#allocation8 + $0x818] sm:$0xff]
        %v1037 = vld [vmem:[#allocation8 + $0x820] sm:$0xff]
        %v1038 = vld [vmem:[#allocation8 + $0x828] sm:$0xff]
        %v1039 = vld [vmem:[#allocation8 + $0x830] sm:$0xff]
        %v1040 = vld [vmem:[#allocation8 + $0x838] sm:$0xff]
        %v1041 = vld [vmem:[#allocation8 + $0x840] sm:$0xff]
        %v1042 = vld [vmem:[#allocation8 + $0x848] sm:$0xff]
        %v1043 = vld [vmem:[#allocation8 + $0x850] sm:$0xff]
        %v1044 = vld [vmem:[#allocation8 + $0x858] sm:$0xff]
        %v1045 = vld [vmem:[#allocation8 + $0x860] sm:$0xff]
        %v1046 = vld [vmem:[#allocation8 + $0x868] sm:$0xff]
        %v1047 = vld [vmem:[#allocation8 + $0x870] sm:$0xff]
        %v1048 = vld [vmem:[#allocation8 + $0x878] sm:$0xff]
        %v1049 = vld [vmem:[#allocation8 + $0x880] sm:$0xff]
        %v1050 = vld [vmem:[#allocation8 + $0x888] sm:$0xff]
        %v1051 = vld [vmem:[#allocation8 + $0x890] sm:$0xff]
        %v1052 = vld [vmem:[#allocation8 + $0x898] sm:$0xff]
        %v1053 = vld [vmem:[#allocation8 + $0x8a0] sm:$0xff]
        %v1054 = vld [vmem:[#allocation8 + $0x8a8] sm:$0xff]
        %v1055 = vld [vmem:[#allocation8 + $0x8b0] sm:$0xff]
        %v1056 = vld [vmem:[#allocation8 + $0x8b8] sm:$0xff]
        %v1057 = vld [vmem:[#allocation8 + $0x8c0] sm:$0xff]
        %v1058 = vld [vmem:[#allocation8 + $0x8c8] sm:$0xff]
        %v1059 = vld [vmem:[#allocation8 + $0x8d0] sm:$0xff]
        %v1060 = vld [vmem:[#allocation8 + $0x8d8] sm:$0xff]
        %v1061 = vld [vmem:[#allocation8 + $0x8e0] sm:$0xff]
        %v1062 = vld [vmem:[#allocation8 + $0x8e8] sm:$0xff]
        %v1063 = vld [vmem:[#allocation8 + $0x8f0] sm:$0xff]
        %v1064 = vld [vmem:[#allocation8 + $0x8f8] sm:$0xff]
        %v1065 = vld [vmem:[#allocation8 + $0x900] sm:$0xff]
        %v1066 = vld [vmem:[#allocation8 + $0x908] sm:$0xff]
        %v1067 = vld [vmem:[#allocation8 + $0x910] sm:$0xff]
        %v1068 = vld [vmem:[#allocation8 + $0x918] sm:$0xff]
        %v1069 = vld [vmem:[#allocation8 + $0x920] sm:$0xff]
        %v1070 = vld [vmem:[#allocation8 + $0x928] sm:$0xff]
        %v1071 = vld [vmem:[#allocation8 + $0x930] sm:$0xff]
        %v1072 = vld [vmem:[#allocation8 + $0x938] sm:$0xff]
        %v1073 = vld [vmem:[#allocation8 + $0x940] sm:$0xff]
        %v1074 = vld [vmem:[#allocation8 + $0x948] sm:$0xff]
        %v1075 = vld [vmem:[#allocation8 + $0x950] sm:$0xff]
        %v1076 = vld [vmem:[#allocation8 + $0x958] sm:$0xff]
        %v1077 = vld [vmem:[#allocation8 + $0x960] sm:$0xff]
        %v1078 = vld [vmem:[#allocation8 + $0x968] sm:$0xff]
        %v1079 = vld [vmem:[#allocation8 + $0x970] sm:$0xff]
        %v1080 = vld [vmem:[#allocation8 + $0x978] sm:$0xff]
        %v1081 = vld [vmem:[#allocation8 + $0x980] sm:$0xff]
        %v1082 = vld [vmem:[#allocation8 + $0x988] sm:$0xff]
        %v1083 = vld [vmem:[#allocation8 + $0x990] sm:$0xff]
        %v1084 = vld [vmem:[#allocation8 + $0x998] sm:$0xff]
        %v1085 = vld [vmem:[#allocation8 + $0x9a0] sm:$0xff]
        %v1086 = vld [vmem:[#allocation8 + $0x9a8] sm:$0xff]
        %v1087 = vld [vmem:[#allocation8 + $0x9b0] sm:$0xff]
        %v1088 = vld [vmem:[#allocation8 + $0x9b8] sm:$0xff]
        %v1089 = vld [vmem:[#allocation8 + $0x9c0] sm:$0xff]
        %v1090 = vld [vmem:[#allocation8 + $0x9c8] sm:$0xff]
        %v1091 = vld [vmem:[#allocation8 + $0x9d0] sm:$0xff]
        %v1092 = vld [vmem:[#allocation8 + $0x9d8] sm:$0xff]
        %v1093 = vld [vmem:[#allocation8 + $0x9e0] sm:$0xff]
        %v1094 = vld [vmem:[#allocation8 + $0x9e8] sm:$0xff]
        %v1095 = vld [vmem:[#allocation8 + $0x9f0] sm:$0xff]
        %v1096 = vld [vmem:[#allocation8 + $0x9f8] sm:$0xff]
        %v1097 = vld [vmem:[#allocation8 + $0xa00] sm:$0xff]
        %v1098 = vld [vmem:[#allocation8 + $0xa08] sm:$0xff]
        %v1099 = vld [vmem:[#allocation8 + $0xa10] sm:$0xff]
        %v1100 = vld [vmem:[#allocation8 + $0xa18] sm:$0xff]
        %v1101 = vld [vmem:[#allocation8 + $0xa20] sm:$0xff]
        %v1102 = vld [vmem:[#allocation8 + $0xa28] sm:$0xff]
        %v1103 = vld [vmem:[#allocation8 + $0xa30] sm:$0xff]
        %v1104 = vld [vmem:[#allocation8 + $0xa38] sm:$0xff]
        %v1105 = vld [vmem:[#allocation8 + $0xa40] sm:$0xff]
        %v1106 = vld [vmem:[#allocation8 + $0xa48] sm:$0xff]
        %v1107 = vld [vmem:[#allocation8 + $0xa50] sm:$0xff]
        %v1108 = vld [vmem:[#allocation8 + $0xa58] sm:$0xff]
        %v1109 = vld [vmem:[#allocation8 + $0xa60] sm:$0xff]
        %v1110 = vld [vmem:[#allocation8 + $0xa68] sm:$0xff]
        %v1111 = vld [vmem:[#allocation8 + $0xa70] sm:$0xff]
        %v1112 = vld [vmem:[#allocation8 + $0xa78] sm:$0xff]
        %v1113 = vld [vmem:[#allocation8 + $0xa80] sm:$0xff]
        %v1114 = vld [vmem:[#allocation8 + $0xa88] sm:$0xff]
        %v1115 = vld [vmem:[#allocation8 + $0xa90] sm:$0xff]
        %v1116 = vld [vmem:[#allocation8 + $0xa98] sm:$0xff]
        %v1117 = vld [vmem:[#allocation8 + $0xaa0] sm:$0xff]
        %v1118 = vld [vmem:[#allocation8 + $0xaa8] sm:$0xff]
        %v1119 = vld [vmem:[#allocation8 + $0xab0] sm:$0xff]
        %v1120 = vld [vmem:[#allocation8 + $0xab8] sm:$0xff]
        %v1121 = vld [vmem:[#allocation8 + $0xac0] sm:$0xff]
        %v1122 = vld [vmem:[#allocation8 + $0xac8] sm:$0xff]
        %v1123 = vld [vmem:[#allocation8 + $0xad0] sm:$0xff]
        %v1124 = vld [vmem:[#allocation8 + $0xad8] sm:$0xff]
        %v1125 = vld [vmem:[#allocation8 + $0xae0] sm:$0xff]
        %v1126 = vld [vmem:[#allocation8 + $0xae8] sm:$0xff]
        %v1127 = vld [vmem:[#allocation8 + $0xaf0] sm:$0xff]
        %v1128 = vld [vmem:[#allocation8 + $0xaf8] sm:$0xff]
        %v1129 = vld [vmem:[#allocation8 + $0xb00] sm:$0xff]
        %v1130 = vld [vmem:[#allocation8 + $0xb08] sm:$0xff]
        %v1131 = vld [vmem:[#allocation8 + $0xb10] sm:$0xff]
        %v1132 = vld [vmem:[#allocation8 + $0xb18] sm:$0xff]
        %v1133 = vld [vmem:[#allocation8 + $0xb20] sm:$0xff]
        %v1134 = vld [vmem:[#allocation8 + $0xb28] sm:$0xff]
        %v1135 = vld [vmem:[#allocation8 + $0xb30] sm:$0xff]
        %v1136 = vld [vmem:[#allocation8 + $0xb38] sm:$0xff]
        %v1137 = vld [vmem:[#allocation8 + $0xb40] sm:$0xff]
        %v1138 = vld [vmem:[#allocation8 + $0xb48] sm:$0xff]
        %v1139 = vld [vmem:[#allocation8 + $0xb50] sm:$0xff]
        %v1140 = vld [vmem:[#allocation8 + $0xb58] sm:$0xff]
        %v1141 = vld [vmem:[#allocation8 + $0xb60] sm:$0xff]
        %v1142 = vld [vmem:[#allocation8 + $0xb68] sm:$0xff]
        %v1143 = vld [vmem:[#allocation8 + $0xb70] sm:$0xff]
        %v1144 = vld [vmem:[#allocation8 + $0xb78] sm:$0xff]
        %v1145 = vld [vmem:[#allocation8 + $0xb80] sm:$0xff]
        %v1146 = vld [vmem:[#allocation8 + $0xb88] sm:$0xff]
        %v1147 = vld [vmem:[#allocation8 + $0xb90] sm:$0xff]
        %v1148 = vld [vmem:[#allocation8 + $0xb98] sm:$0xff]
        %v1149 = vld [vmem:[#allocation8 + $0xba0] sm:$0xff]
        %v1150 = vld [vmem:[#allocation8 + $0xba8] sm:$0xff]
        %v1151 = vld [vmem:[#allocation8 + $0xbb0] sm:$0xff]
        %v1152 = vld [vmem:[#allocation8 + $0xbb8] sm:$0xff]
        %v1153 = vld [vmem:[#allocation8 + $0xbc0] sm:$0xff]
        %v1154 = vld [vmem:[#allocation8 + $0xbc8] sm:$0xff]
        %v1155 = vld [vmem:[#allocation8 + $0xbd0] sm:$0xff]
        %v1156 = vld [vmem:[#allocation8 + $0xbd8] sm:$0xff]
        %v1157 = vld [vmem:[#allocation8 + $0xbe0] sm:$0xff]
        %v1158 = vld [vmem:[#allocation8 + $0xbe8] sm:$0xff]
        %v1159 = vld [vmem:[#allocation8 + $0xbf0] sm:$0xff]
        %v1160 = vld [vmem:[#allocation8 + $0xbf8] sm:$0xff]
        %v1161 = vld [vmem:[#allocation8 + $0xc00] sm:$0xff]
        %v1162 = vld [vmem:[#allocation8 + $0xc08] sm:$0xff]
        %v1163 = vld [vmem:[#allocation8 + $0xc10] sm:$0xff]
        %v1164 = vld [vmem:[#allocation8 + $0xc18] sm:$0xff]
        %v1165 = vld [vmem:[#allocation8 + $0xc20] sm:$0xff]
        %v1166 = vld [vmem:[#allocation8 + $0xc28] sm:$0xff]
        %v1167 = vld [vmem:[#allocation8 + $0xc30] sm:$0xff]
        %v1168 = vld [vmem:[#allocation8 + $0xc38] sm:$0xff]
        %v1169 = vld [vmem:[#allocation8 + $0xc40] sm:$0xff]
        %v1170 = vld [vmem:[#allocation8 + $0xc48] sm:$0xff]
        %v1171 = vld [vmem:[#allocation8 + $0xc50] sm:$0xff]
        %v1172 = vld [vmem:[#allocation8 + $0xc58] sm:$0xff]
        %v1173 = vld [vmem:[#allocation8 + $0xc60] sm:$0xff]
        %v1174 = vld [vmem:[#allocation8 + $0xc68] sm:$0xff]
        %v1175 = vld [vmem:[#allocation8 + $0xc70] sm:$0xff]
        %v1176 = vld [vmem:[#allocation8 + $0xc78] sm:$0xff]
        %v1177 = vld [vmem:[#allocation8 + $0xc80] sm:$0xff]
        %v1178 = vld [vmem:[#allocation8 + $0xc88] sm:$0xff]
        %v1179 = vld [vmem:[#allocation8 + $0xc90] sm:$0xff]
        %v1180 = vld [vmem:[#allocation8 + $0xc98] sm:$0xff]
        %v1181 = vld [vmem:[#allocation8 + $0xca0] sm:$0xff]
        %v1182 = vld [vmem:[#allocation8 + $0xca8] sm:$0xff]
        %v1183 = vld [vmem:[#allocation8 + $0xcb0] sm:$0xff]
        %v1184 = vld [vmem:[#allocation8 + $0xcb8] sm:$0xff]
        %v1185 = vld [vmem:[#allocation8 + $0xcc0] sm:$0xff]
        %v1186 = vld [vmem:[#allocation8 + $0xcc8] sm:$0xff]
        %v1187 = vld [vmem:[#allocation8 + $0xcd0] sm:$0xff]
        %v1188 = vld [vmem:[#allocation8 + $0xcd8] sm:$0xff]
        %v1189 = vld [vmem:[#allocation8 + $0xce0] sm:$0xff]
        %v1190 = vld [vmem:[#allocation8 + $0xce8] sm:$0xff]
        %v1191 = vld [vmem:[#allocation8 + $0xcf0] sm:$0xff]
        %v1192 = vld [vmem:[#allocation8 + $0xcf8] sm:$0xff]
        %v1193 = vld [vmem:[#allocation8 + $0xd00] sm:$0xff]
        %v1194 = vld [vmem:[#allocation8 + $0xd08] sm:$0xff]
        %v1195 = vld [vmem:[#allocation8 + $0xd10] sm:$0xff]
        %v1196 = vld [vmem:[#allocation8 + $0xd18] sm:$0xff]
        %v1197 = vld [vmem:[#allocation8 + $0xd20] sm:$0xff]
        %v1198 = vld [vmem:[#allocation8 + $0xd28] sm:$0xff]
        %v1199 = vld [vmem:[#allocation8 + $0xd30] sm:$0xff]
        %v1200 = vld [vmem:[#allocation8 + $0xd38] sm:$0xff]
        %v1201 = vld [vmem:[#allocation8 + $0xd40] sm:$0xff]
        %v1202 = vld [vmem:[#allocation8 + $0xd48] sm:$0xff]
        %v1203 = vld [vmem:[#allocation8 + $0xd50] sm:$0xff]
        %v1204 = vld [vmem:[#allocation8 + $0xd58] sm:$0xff]
        %v1205 = vld [vmem:[#allocation8 + $0xd60] sm:$0xff]
        %v1206 = vld [vmem:[#allocation8 + $0xd68] sm:$0xff]
        %v1207 = vld [vmem:[#allocation8 + $0xd70] sm:$0xff]
        %v1208 = vld [vmem:[#allocation8 + $0xd78] sm:$0xff]
        %v1209 = vld [vmem:[#allocation8 + $0xd80] sm:$0xff]
        %v1210 = vld [vmem:[#allocation8 + $0xd88] sm:$0xff]
        %v1211 = vld [vmem:[#allocation8 + $0xd90] sm:$0xff]
        %v1212 = vld [vmem:[#allocation8 + $0xd98] sm:$0xff]
        %v1213 = vld [vmem:[#allocation8 + $0xda0] sm:$0xff]
        %v1214 = vld [vmem:[#allocation8 + $0xda8] sm:$0xff]
        %v1215 = vld [vmem:[#allocation8 + $0xdb0] sm:$0xff]
        %v1216 = vld [vmem:[#allocation8 + $0xdb8] sm:$0xff]
        %v1217 = vld [vmem:[#allocation8 + $0xdc0] sm:$0xff]
        %v1218 = vld [vmem:[#allocation8 + $0xdc8] sm:$0xff]
        %v1219 = vld [vmem:[#allocation8 + $0xdd0] sm:$0xff]
        %v1220 = vld [vmem:[#allocation8 + $0xdd8] sm:$0xff]
        %v1221 = vld [vmem:[#allocation8 + $0xde0] sm:$0xff]
        %v1222 = vld [vmem:[#allocation8 + $0xde8] sm:$0xff]
        %v1223 = vld [vmem:[#allocation8 + $0xdf0] sm:$0xff]
        %v1224 = vld [vmem:[#allocation8 + $0xdf8] sm:$0xff]
        %v1225 = vld [vmem:[#allocation8 + $0xe00] sm:$0xff]
        %v1226 = vld [vmem:[#allocation8 + $0xe08] sm:$0xff]
        %v1227 = vld [vmem:[#allocation8 + $0xe10] sm:$0xff]
        %v1228 = vld [vmem:[#allocation8 + $0xe18] sm:$0xff]
        %v1229 = vld [vmem:[#allocation8 + $0xe20] sm:$0xff]
        %v1230 = vld [vmem:[#allocation8 + $0xe28] sm:$0xff]
        %v1231 = vld [vmem:[#allocation8 + $0xe30] sm:$0xff]
        %v1232 = vld [vmem:[#allocation8 + $0xe38] sm:$0xff]
        %v1233 = vld [vmem:[#allocation8 + $0xe40] sm:$0xff]
        %v1234 = vld [vmem:[#allocation8 + $0xe48] sm:$0xff]
        %v1235 = vld [vmem:[#allocation8 + $0xe50] sm:$0xff]
        %v1236 = vld [vmem:[#allocation8 + $0xe58] sm:$0xff]
        %v1237 = vld [vmem:[#allocation8 + $0xe60] sm:$0xff]
        %v1238 = vld [vmem:[#allocation8 + $0xe68] sm:$0xff]
        %v1239 = vld [vmem:[#allocation8 + $0xe70] sm:$0xff]
        %v1240 = vld [vmem:[#allocation8 + $0xe78] sm:$0xff]
        %v1241 = vld [vmem:[#allocation8 + $0xe80] sm:$0xff]
        %v1242 = vld [vmem:[#allocation8 + $0xe88] sm:$0xff]
        %v1243 = vld [vmem:[#allocation8 + $0xe90] sm:$0xff]
        %v1244 = vld [vmem:[#allocation8 + $0xe98] sm:$0xff]
        %v1245 = vld [vmem:[#allocation8 + $0xea0] sm:$0xff]
        %v1246 = vld [vmem:[#allocation8 + $0xea8] sm:$0xff]
        %v1247 = vld [vmem:[#allocation8 + $0xeb0] sm:$0xff]
        %v1248 = vld [vmem:[#allocation8 + $0xeb8] sm:$0xff]
        %v1249 = vld [vmem:[#allocation8 + $0xec0] sm:$0xff]
        %v1250 = vld [vmem:[#allocation8 + $0xec8] sm:$0xff]
        %v1251 = vld [vmem:[#allocation8 + $0xed0] sm:$0xff]
        %v1252 = vld [vmem:[#allocation8 + $0xed8] sm:$0xff]
        %v1253 = vld [vmem:[#allocation8 + $0xee0] sm:$0xff]
        %v1254 = vld [vmem:[#allocation8 + $0xee8] sm:$0xff]
        %v1255 = vld [vmem:[#allocation8 + $0xef0] sm:$0xff]
        %v1256 = vld [vmem:[#allocation8 + $0xef8] sm:$0xff]
        %v1257 = vld [vmem:[#allocation8 + $0xf00] sm:$0xff]
        %v1258 = vld [vmem:[#allocation8 + $0xf08] sm:$0xff]
        %v1259 = vld [vmem:[#allocation8 + $0xf10] sm:$0xff]
        %v1260 = vld [vmem:[#allocation8 + $0xf18] sm:$0xff]
        %v1261 = vld [vmem:[#allocation8 + $0xf20] sm:$0xff]
        %v1262 = vld [vmem:[#allocation8 + $0xf28] sm:$0xff]
        %v1263 = vld [vmem:[#allocation8 + $0xf30] sm:$0xff]
        %v1264 = vld [vmem:[#allocation8 + $0xf38] sm:$0xff]
        %v1265 = vld [vmem:[#allocation8 + $0xf40] sm:$0xff]
        %v1266 = vld [vmem:[#allocation8 + $0xf48] sm:$0xff]
        %v1267 = vld [vmem:[#allocation8 + $0xf50] sm:$0xff]
        %v1268 = vld [vmem:[#allocation8 + $0xf58] sm:$0xff]
        %v1269 = vld [vmem:[#allocation8 + $0xf60] sm:$0xff]
        %v1270 = vld [vmem:[#allocation8 + $0xf68] sm:$0xff]
        %v1271 = vld [vmem:[#allocation8 + $0xf70] sm:$0xff]
        %v1272 = vld [vmem:[#allocation8 + $0xf78] sm:$0xff]
        %v1273 = vld [vmem:[#allocation8 + $0xf80] sm:$0xff]
        %v1274 = vld [vmem:[#allocation8 + $0xf88] sm:$0xff]
        %v1275 = vld [vmem:[#allocation8 + $0xf90] sm:$0xff]
        %v1276 = vld [vmem:[#allocation8 + $0xf98] sm:$0xff]
        %v1277 = vld [vmem:[#allocation8 + $0xfa0] sm:$0xff]
        %v1278 = vld [vmem:[#allocation8 + $0xfa8] sm:$0xff]
        %v1279 = vld [vmem:[#allocation8 + $0xfb0] sm:$0xff]
        %v1280 = vld [vmem:[#allocation8 + $0xfb8] sm:$0xff]
        %v1281 = vld [vmem:[#allocation8 + $0xfc0] sm:$0xff]
        %v1282 = vld [vmem:[#allocation8 + $0xfc8] sm:$0xff]
        %v1283 = vld [vmem:[#allocation8 + $0xfd0] sm:$0xff]
        %v1284 = vld [vmem:[#allocation8 + $0xfd8] sm:$0xff]
        %v1285 = vld [vmem:[#allocation8 + $0xfe0] sm:$0xff]
        %v1286 = vld [vmem:[#allocation8 + $0xfe8] sm:$0xff]
        %v1287 = vld [vmem:[#allocation8 + $0xff0] sm:$0xff]
        %v1288 = vld [vmem:[#allocation8 + $0xff8] sm:$0xff]
        %v1289 = vld [vmem:[#allocation8 + $0x1000] sm:$0xff]
        %v1290 = vld [vmem:[#allocation8 + $0x1008] sm:$0xff]
        %v1291 = vld [vmem:[#allocation8 + $0x1010] sm:$0xff]
        %v1292 = vld [vmem:[#allocation8 + $0x1018] sm:$0xff]
        %v1293 = vld [vmem:[#allocation8 + $0x1020] sm:$0xff]
        %v1294 = vld [vmem:[#allocation8 + $0x1028] sm:$0xff]
        %v1295 = vld [vmem:[#allocation8 + $0x1030] sm:$0xff]
        %v1296 = vld [vmem:[#allocation8 + $0x1038] sm:$0xff]
        %v1297 = vld [vmem:[#allocation8 + $0x1040] sm:$0xff]
        %v1298 = vld [vmem:[#allocation8 + $0x1048] sm:$0xff]
        %v1299 = vld [vmem:[#allocation8 + $0x1050] sm:$0xff]
        %v1300 = vld [vmem:[#allocation8 + $0x1058] sm:$0xff]
        %v1301 = vld [vmem:[#allocation8 + $0x1060] sm:$0xff]
        %v1302 = vld [vmem:[#allocation8 + $0x1068] sm:$0xff]
        %v1303 = vld [vmem:[#allocation8 + $0x1070] sm:$0xff]
        %v1304 = vld [vmem:[#allocation8 + $0x1078] sm:$0xff]
        %v1305 = vld [vmem:[#allocation8 + $0x1080] sm:$0xff]
        %v1306 = vld [vmem:[#allocation8 + $0x1088] sm:$0xff]
        %v1307 = vld [vmem:[#allocation8 + $0x1090] sm:$0xff]
        %v1308 = vld [vmem:[#allocation8 + $0x1098] sm:$0xff]
        %v1309 = vld [vmem:[#allocation8 + $0x10a0] sm:$0xff]
        %v1310 = vld [vmem:[#allocation8 + $0x10a8] sm:$0xff]
        %v1311 = vld [vmem:[#allocation8 + $0x10b0] sm:$0xff]
        %v1312 = vld [vmem:[#allocation8 + $0x10b8] sm:$0xff]
        %v1313 = vld [vmem:[#allocation8 + $0x10c0] sm:$0xff]
        %v1314 = vld [vmem:[#allocation8 + $0x10c8] sm:$0xff]
        %v1315 = vld [vmem:[#allocation8 + $0x10d0] sm:$0xff]
        %v1316 = vld [vmem:[#allocation8 + $0x10d8] sm:$0xff]
        %v1317 = vld [vmem:[#allocation8 + $0x10e0] sm:$0xff]
        %v1318 = vld [vmem:[#allocation8 + $0x10e8] sm:$0xff]
        %v1319 = vld [vmem:[#allocation8 + $0x10f0] sm:$0xff]
        %v1320 = vld [vmem:[#allocation8 + $0x10f8] sm:$0xff]
        %v1321 = vld [vmem:[#allocation8 + $0x1100] sm:$0xff]
        %v1322 = vld [vmem:[#allocation8 + $0x1108] sm:$0xff]
        %v1323 = vld [vmem:[#allocation8 + $0x1110] sm:$0xff]
        %v1324 = vld [vmem:[#allocation8 + $0x1118] sm:$0xff]
        %v1325 = vld [vmem:[#allocation8 + $0x1120] sm:$0xff]
        %v1326 = vld [vmem:[#allocation8 + $0x1128] sm:$0xff]
        %v1327 = vld [vmem:[#allocation8 + $0x1130] sm:$0xff]
        %v1328 = vld [vmem:[#allocation8 + $0x1138] sm:$0xff]
        %v1329 = vld [vmem:[#allocation8 + $0x1140] sm:$0xff]
        %v1330 = vld [vmem:[#allocation8 + $0x1148] sm:$0xff]
        %v1331 = vld [vmem:[#allocation8 + $0x1150] sm:$0xff]
        %v1332 = vld [vmem:[#allocation8 + $0x1158] sm:$0xff]
        %v1333 = vld [vmem:[#allocation8 + $0x1160] sm:$0xff]
        %v1334 = vld [vmem:[#allocation8 + $0x1168] sm:$0xff]
        %v1335 = vld [vmem:[#allocation8 + $0x1170] sm:$0xff]
        %v1336 = vld [vmem:[#allocation8 + $0x1178] sm:$0xff]
        %v1337 = vld [vmem:[#allocation8 + $0x1180] sm:$0xff]
        %v1338 = vld [vmem:[#allocation8 + $0x1188] sm:$0xff]
        %v1339 = vld [vmem:[#allocation8 + $0x1190] sm:$0xff]
        %v1340 = vld [vmem:[#allocation8 + $0x1198] sm:$0xff]
        %v1341 = vld [vmem:[#allocation8 + $0x11a0] sm:$0xff]
        %v1342 = vld [vmem:[#allocation8 + $0x11a8] sm:$0xff]
        %v1343 = vld [vmem:[#allocation8 + $0x11b0] sm:$0xff]
        %v1344 = vld [vmem:[#allocation8 + $0x11b8] sm:$0xff]
        %v1345 = vld [vmem:[#allocation8 + $0x11c0] sm:$0xff]
        %v1346 = vld [vmem:[#allocation8 + $0x11c8] sm:$0xff]
        %v1347 = vld [vmem:[#allocation8 + $0x11d0] sm:$0xff]
        %v1348 = vld [vmem:[#allocation8 + $0x11d8] sm:$0xff]
        %v1349 = vld [vmem:[#allocation8 + $0x11e0] sm:$0xff]
        %v1350 = vld [vmem:[#allocation8 + $0x11e8] sm:$0xff]
        %v1351 = vld [vmem:[#allocation8 + $0x11f0] sm:$0xff]
        %v1352 = vld [vmem:[#allocation8 + $0x11f8] sm:$0xff]
        %v1353 = vld [vmem:[#allocation8 + $0x1200] sm:$0xff]
        %v1354 = vld [vmem:[#allocation8 + $0x1208] sm:$0xff]
        %v1355 = vld [vmem:[#allocation8 + $0x1210] sm:$0xff]
        %v1356 = vld [vmem:[#allocation8 + $0x1218] sm:$0xff]
        %v1357 = vld [vmem:[#allocation8 + $0x1220] sm:$0xff]
        %v1358 = vld [vmem:[#allocation8 + $0x1228] sm:$0xff]
        %v1359 = vld [vmem:[#allocation8 + $0x1230] sm:$0xff]
        %v1360 = vld [vmem:[#allocation8 + $0x1238] sm:$0xff]
        %v1361 = vld [vmem:[#allocation8 + $0x1240] sm:$0xff]
        %v1362 = vld [vmem:[#allocation8 + $0x1248] sm:$0xff]
        %v1363 = vld [vmem:[#allocation8 + $0x1250] sm:$0xff]
        %v1364 = vld [vmem:[#allocation8 + $0x1258] sm:$0xff]
        %v1365 = vld [vmem:[#allocation8 + $0x1260] sm:$0xff]
        %v1366 = vld [vmem:[#allocation8 + $0x1268] sm:$0xff]
        %v1367 = vld [vmem:[#allocation8 + $0x1270] sm:$0xff]
        %v1368 = vld [vmem:[#allocation8 + $0x1278] sm:$0xff]
        %v1369 = vld [vmem:[#allocation8 + $0x1280] sm:$0xff]
        %v1370 = vld [vmem:[#allocation8 + $0x1288] sm:$0xff]
        %v1371 = vld [vmem:[#allocation8 + $0x1290] sm:$0xff]
        %v1372 = vld [vmem:[#allocation8 + $0x1298] sm:$0xff]
        %v1373 = vld [vmem:[#allocation8 + $0x12a0] sm:$0xff]
        %v1374 = vld [vmem:[#allocation8 + $0x12a8] sm:$0xff]
        %v1375 = vld [vmem:[#allocation8 + $0x12b0] sm:$0xff]
        %v1376 = vld [vmem:[#allocation8 + $0x12b8] sm:$0xff]
        %v1377 = vld [vmem:[#allocation8 + $0x12c0] sm:$0xff]
        %v1378 = vld [vmem:[#allocation8 + $0x12c8] sm:$0xff]
        %v1379 = vld [vmem:[#allocation8 + $0x12d0] sm:$0xff]
        %v1380 = vld [vmem:[#allocation8 + $0x12d8] sm:$0xff]
        %v1381 = vld [vmem:[#allocation8 + $0x12e0] sm:$0xff]
        %v1382 = vld [vmem:[#allocation8 + $0x12e8] sm:$0xff]
        %v1383 = vld [vmem:[#allocation8 + $0x12f0] sm:$0xff]
        %v1384 = vld [vmem:[#allocation8 + $0x12f8] sm:$0xff]
        %v1385 = vld [vmem:[#allocation8 + $0x1300] sm:$0xff]
        %v1386 = vld [vmem:[#allocation8 + $0x1308] sm:$0xff]
        %v1387 = vld [vmem:[#allocation8 + $0x1310] sm:$0xff]
        %v1388 = vld [vmem:[#allocation8 + $0x1318] sm:$0xff]
        %v1389 = vld [vmem:[#allocation8 + $0x1320] sm:$0xff]
        %v1390 = vld [vmem:[#allocation8 + $0x1328] sm:$0xff]
        %v1391 = vld [vmem:[#allocation8 + $0x1330] sm:$0xff]
        %v1392 = vld [vmem:[#allocation8 + $0x1338] sm:$0xff]
        %v1393 = vld [vmem:[#allocation8 + $0x1340] sm:$0xff]
        %v1394 = vld [vmem:[#allocation8 + $0x1348] sm:$0xff]
        %v1395 = vld [vmem:[#allocation8 + $0x1350] sm:$0xff]
        %v1396 = vld [vmem:[#allocation8 + $0x1358] sm:$0xff]
        %v1397 = vld [vmem:[#allocation8 + $0x1360] sm:$0xff]
        %v1398 = vld [vmem:[#allocation8 + $0x1368] sm:$0xff]
        %v1399 = vld [vmem:[#allocation8 + $0x1370] sm:$0xff]
        %v1400 = vld [vmem:[#allocation8 + $0x1378] sm:$0xff]
        %v1401 = vld [vmem:[#allocation8 + $0x1380] sm:$0xff]
        %v1402 = vld [vmem:[#allocation8 + $0x1388] sm:$0xff]
        %v1403 = vld [vmem:[#allocation8 + $0x1390] sm:$0xff]
        %v1404 = vld [vmem:[#allocation8 + $0x1398] sm:$0xff]
        %v1405 = vld [vmem:[#allocation8 + $0x13a0] sm:$0xff]
        %v1406 = vld [vmem:[#allocation8 + $0x13a8] sm:$0xff]
        %v1407 = vld [vmem:[#allocation8 + $0x13b0] sm:$0xff]
        %v1408 = vld [vmem:[#allocation8 + $0x13b8] sm:$0xff]
        %v1409 = vld [vmem:[#allocation8 + $0x13c0] sm:$0xff]
        %v1410 = vld [vmem:[#allocation8 + $0x13c8] sm:$0xff]
        %v1411 = vld [vmem:[#allocation8 + $0x13d0] sm:$0xff]
        %v1412 = vld [vmem:[#allocation8 + $0x13d8] sm:$0xff]
        %v1413 = vld [vmem:[#allocation8 + $0x13e0] sm:$0xff]
        %v1414 = vld [vmem:[#allocation8 + $0x13e8] sm:$0xff]
        %v1415 = vld [vmem:[#allocation8 + $0x13f0] sm:$0xff]
        %v1416 = vld [vmem:[#allocation8 + $0x13f8] sm:$0xff]
        %v1417 = vld [vmem:[#allocation8 + $0x1400] sm:$0xff]
        %v1418 = vld [vmem:[#allocation8 + $0x1408] sm:$0xff]
        %v1419 = vld [vmem:[#allocation8 + $0x1410] sm:$0xff]
        %v1420 = vld [vmem:[#allocation8 + $0x1418] sm:$0xff]
        %v1421 = vld [vmem:[#allocation8 + $0x1420] sm:$0xff]
        %v1422 = vld [vmem:[#allocation8 + $0x1428] sm:$0xff]
        %v1423 = vld [vmem:[#allocation8 + $0x1430] sm:$0xff]
        %v1424 = vld [vmem:[#allocation8 + $0x1438] sm:$0xff]
        %v1425 = vld [vmem:[#allocation8 + $0x1440] sm:$0xff]
        %v1426 = vld [vmem:[#allocation8 + $0x1448] sm:$0xff]
        %v1427 = vld [vmem:[#allocation8 + $0x1450] sm:$0xff]
        %v1428 = vld [vmem:[#allocation8 + $0x1458] sm:$0xff]
        %v1429 = vld [vmem:[#allocation8 + $0x1460] sm:$0xff]
        %v1430 = vld [vmem:[#allocation8 + $0x1468] sm:$0xff]
        %v1431 = vld [vmem:[#allocation8 + $0x1470] sm:$0xff]
        %v1432 = vld [vmem:[#allocation8 + $0x1478] sm:$0xff]
        %v1433 = vld [vmem:[#allocation8 + $0x1480] sm:$0xff]
        %v1434 = vld [vmem:[#allocation8 + $0x1488] sm:$0xff]
        %v1435 = vld [vmem:[#allocation8 + $0x1490] sm:$0xff]
        %v1436 = vld [vmem:[#allocation8 + $0x1498] sm:$0xff]
        %v1437 = vld [vmem:[#allocation8 + $0x14a0] sm:$0xff]
        %v1438 = vld [vmem:[#allocation8 + $0x14a8] sm:$0xff]
        %v1439 = vld [vmem:[#allocation8 + $0x14b0] sm:$0xff]
        %v1440 = vld [vmem:[#allocation8 + $0x14b8] sm:$0xff]
        %v1441 = vld [vmem:[#allocation8 + $0x14c0] sm:$0xff]
        %v1442 = vld [vmem:[#allocation8 + $0x14c8] sm:$0xff]
        %v1443 = vld [vmem:[#allocation8 + $0x14d0] sm:$0xff]
        %v1444 = vld [vmem:[#allocation8 + $0x14d8] sm:$0xff]
        %v1445 = vld [vmem:[#allocation8 + $0x14e0] sm:$0xff]
        %v1446 = vld [vmem:[#allocation8 + $0x14e8] sm:$0xff]
        %v1447 = vld [vmem:[#allocation8 + $0x14f0] sm:$0xff]
        %v1448 = vld [vmem:[#allocation8 + $0x14f8] sm:$0xff]
        %v1449 = vld [vmem:[#allocation8 + $0x1500] sm:$0xff]
        %v1450 = vld [vmem:[#allocation8 + $0x1508] sm:$0xff]
        %v1451 = vld [vmem:[#allocation8 + $0x1510] sm:$0xff]
        %v1452 = vld [vmem:[#allocation8 + $0x1518] sm:$0xff]
        %v1453 = vld [vmem:[#allocation8 + $0x1520] sm:$0xff]
        %v1454 = vld [vmem:[#allocation8 + $0x1528] sm:$0xff]
        %v1455 = vld [vmem:[#allocation8 + $0x1530] sm:$0xff]
        %v1456 = vld [vmem:[#allocation8 + $0x1538] sm:$0xff]
        %v1457 = vld [vmem:[#allocation8 + $0x1540] sm:$0xff]
        %v1458 = vld [vmem:[#allocation8 + $0x1548] sm:$0xff]
        %v1459 = vld [vmem:[#allocation8 + $0x1550] sm:$0xff]
        %v1460 = vld [vmem:[#allocation8 + $0x1558] sm:$0xff]
        %v1461 = vld [vmem:[#allocation8 + $0x1560] sm:$0xff]
        %v1462 = vld [vmem:[#allocation8 + $0x1568] sm:$0xff]
        %v1463 = vld [vmem:[#allocation8 + $0x1570] sm:$0xff]
        %v1464 = vld [vmem:[#allocation8 + $0x1578] sm:$0xff]
        %v1465 = vld [vmem:[#allocation8 + $0x1580] sm:$0xff]
        %v1466 = vld [vmem:[#allocation8 + $0x1588] sm:$0xff]
        %v1467 = vld [vmem:[#allocation8 + $0x1590] sm:$0xff]
        %v1468 = vld [vmem:[#allocation8 + $0x1598] sm:$0xff]
        %v1469 = vld [vmem:[#allocation8 + $0x15a0] sm:$0xff]
        %v1470 = vld [vmem:[#allocation8 + $0x15a8] sm:$0xff]
        %v1471 = vld [vmem:[#allocation8 + $0x15b0] sm:$0xff]
        %v1472 = vld [vmem:[#allocation8 + $0x15b8] sm:$0xff]
        %v1473 = vld [vmem:[#allocation8 + $0x15c0] sm:$0xff]
        %v1474 = vld [vmem:[#allocation8 + $0x15c8] sm:$0xff]
        %v1475 = vld [vmem:[#allocation8 + $0x15d0] sm:$0xff]
        %v1476 = vld [vmem:[#allocation8 + $0x15d8] sm:$0xff]
        %v1477 = vld [vmem:[#allocation8 + $0x15e0] sm:$0xff]
        %v1478 = vld [vmem:[#allocation8 + $0x15e8] sm:$0xff]
        %v1479 = vld [vmem:[#allocation8 + $0x15f0] sm:$0xff]
        %v1480 = vld [vmem:[#allocation8 + $0x15f8] sm:$0xff]
        %v1481 = vld [vmem:[#allocation8 + $0x1600] sm:$0xff]
        %v1482 = vld [vmem:[#allocation8 + $0x1608] sm:$0xff]
        %v1483 = vld [vmem:[#allocation8 + $0x1610] sm:$0xff]
        %v1484 = vld [vmem:[#allocation8 + $0x1618] sm:$0xff]
        %v1485 = vld [vmem:[#allocation8 + $0x1620] sm:$0xff]
        %v1486 = vld [vmem:[#allocation8 + $0x1628] sm:$0xff]
        %v1487 = vld [vmem:[#allocation8 + $0x1630] sm:$0xff]
        %v1488 = vld [vmem:[#allocation8 + $0x1638] sm:$0xff]
        %v1489 = vld [vmem:[#allocation8 + $0x1640] sm:$0xff]
        %v1490 = vld [vmem:[#allocation8 + $0x1648] sm:$0xff]
        %v1491 = vld [vmem:[#allocation8 + $0x1650] sm:$0xff]
        %v1492 = vld [vmem:[#allocation8 + $0x1658] sm:$0xff]
        %v1493 = vld [vmem:[#allocation8 + $0x1660] sm:$0xff]
        %v1494 = vld [vmem:[#allocation8 + $0x1668] sm:$0xff]
        %v1495 = vld [vmem:[#allocation8 + $0x1670] sm:$0xff]
        %v1496 = vld [vmem:[#allocation8 + $0x1678] sm:$0xff]
        %v1497 = vld [vmem:[#allocation8 + $0x1680] sm:$0xff]
        %v1498 = vld [vmem:[#allocation8 + $0x1688] sm:$0xff]
        %v1499 = vld [vmem:[#allocation8 + $0x1690] sm:$0xff]
        %v1500 = vld [vmem:[#allocation8 + $0x1698] sm:$0xff]
        %v1501 = vld [vmem:[#allocation8 + $0x16a0] sm:$0xff]
        %v1502 = vld [vmem:[#allocation8 + $0x16a8] sm:$0xff]
        %v1503 = vld [vmem:[#allocation8 + $0x16b0] sm:$0xff]
        %v1504 = vld [vmem:[#allocation8 + $0x16b8] sm:$0xff]
        %v1505 = vld [vmem:[#allocation8 + $0x16c0] sm:$0xff]
        %v1506 = vld [vmem:[#allocation8 + $0x16c8] sm:$0xff]
        %v1507 = vld [vmem:[#allocation8 + $0x16d0] sm:$0xff]
        %v1508 = vld [vmem:[#allocation8 + $0x16d8] sm:$0xff]
        %v1509 = vld [vmem:[#allocation8 + $0x16e0] sm:$0xff]
        %v1510 = vld [vmem:[#allocation8 + $0x16e8] sm:$0xff]
        %v1511 = vld [vmem:[#allocation8 + $0x16f0] sm:$0xff]
        %v1512 = vld [vmem:[#allocation8 + $0x16f8] sm:$0xff]
        %v1513 = vld [vmem:[#allocation8 + $0x1700] sm:$0xff]
        %v1514 = vld [vmem:[#allocation8 + $0x1708] sm:$0xff]
        %v1515 = vld [vmem:[#allocation8 + $0x1710] sm:$0xff]
        %v1516 = vld [vmem:[#allocation8 + $0x1718] sm:$0xff]
        %v1517 = vld [vmem:[#allocation8 + $0x1720] sm:$0xff]
        %v1518 = vld [vmem:[#allocation8 + $0x1728] sm:$0xff]
        %v1519 = vld [vmem:[#allocation8 + $0x1730] sm:$0xff]
        %v1520 = vld [vmem:[#allocation8 + $0x1738] sm:$0xff]
        %v1521 = vld [vmem:[#allocation8 + $0x1740] sm:$0xff]
        %v1522 = vld [vmem:[#allocation8 + $0x1748] sm:$0xff]
        %v1523 = vld [vmem:[#allocation8 + $0x1750] sm:$0xff]
        %v1524 = vld [vmem:[#allocation8 + $0x1758] sm:$0xff]
        %v1525 = vld [vmem:[#allocation8 + $0x1760] sm:$0xff]
        %v1526 = vld [vmem:[#allocation8 + $0x1768] sm:$0xff]
        %v1527 = vld [vmem:[#allocation8 + $0x1770] sm:$0xff]
        %v1528 = vld [vmem:[#allocation8 + $0x1778] sm:$0xff]
        %v1529 = vld [vmem:[#allocation8 + $0x1780] sm:$0xff]
        %v1530 = vld [vmem:[#allocation8 + $0x1788] sm:$0xff]
        %v1531 = vld [vmem:[#allocation8 + $0x1790] sm:$0xff]
        %v1532 = vld [vmem:[#allocation8 + $0x1798] sm:$0xff]
        %v1533 = vld [vmem:[#allocation8 + $0x17a0] sm:$0xff]
        %v1534 = vld [vmem:[#allocation8 + $0x17a8] sm:$0xff]
        %v1535 = vld [vmem:[#allocation8 + $0x17b0] sm:$0xff]
        %v1536 = vld [vmem:[#allocation8 + $0x17b8] sm:$0xff]
        %v1537 = vld [vmem:[#allocation8 + $0x17c0] sm:$0xff]
        %v1538 = vld [vmem:[#allocation8 + $0x17c8] sm:$0xff]
        %v1539 = vld [vmem:[#allocation8 + $0x17d0] sm:$0xff]
        %v1540 = vld [vmem:[#allocation8 + $0x17d8] sm:$0xff]
        %v1541 = vld [vmem:[#allocation8 + $0x17e0] sm:$0xff]
        %v1542 = vld [vmem:[#allocation8 + $0x17e8] sm:$0xff]
        %v1543 = vld [vmem:[#allocation8 + $0x17f0] sm:$0xff]
        %v1544 = vld [vmem:[#allocation8 + $0x17f8] sm:$0xff]
        %v1545 = vld [vmem:[#allocation10] sm:$0xf]
        %v1547 = vperm.slane %v1545, 0
        %v1548 = vperm.slane %v1545, 1
        %v1549 = vperm.slane %v1545, 2
        %v1550 = vperm.slane %v1545, 3
        %1555 = vmatpush.msra.mxu0 %v837
        %1556 = vmatpush.msra.mxu0 %v833
        %1557 = vmatpush.msra.mxu0 %v829
        %1558 = vmatpush.msra.mxu0 %v825
        %1559 = vmatpush.msra.mxu0 %v821
        %1560 = vmatpush.msra.mxu0 %v817
        %1561 = vmatpush.msra.mxu0 %v813
        %1562 = vmatpush.msra.mxu0 %v809
        %1563 = vmatpush.msra.mxu0 %v805
        %1564 = vmatpush.msra.mxu0 %v801
        %1565 = vmatpush.msra.mxu0 %v797
        %1566 = vmatpush.msra.mxu0 %v793
        %1567 = vmatpush.msra.mxu0 %v789
        %1568 = vmatpush.msra.mxu0 %v785
        %1569 = vmatpush.msra.mxu0 %v781
        %1570 = vmatpush.msra.mxu0 %v777
        %1571 = vmatmul.f32.gmra.mxu0 %v765
        %v1572 = vpop.f32.mrf.mxu0
        %v1573 = vadd.f32 %v1547, %v1572
        %1574 = vdwg.mxu0
        %1575 = vmatpush.msra.mxu0 %v901
        %1576 = vmatpush.msra.mxu0 %v897
        %1577 = vmatpush.msra.mxu0 %v893
        %1578 = vmatpush.msra.mxu0 %v889
        %1579 = vmatpush.msra.mxu0 %v885
        %1580 = vmatpush.msra.mxu0 %v881
        %1581 = vmatpush.msra.mxu0 %v877
        %1582 = vmatpush.msra.mxu0 %v873
        %1583 = vmatpush.msra.mxu0 %v869
        %1584 = vmatpush.msra.mxu0 %v865
        %1585 = vmatpush.msra.mxu0 %v861
        %1586 = vmatpush.msra.mxu0 %v857
        %1587 = vmatpush.msra.mxu0 %v853
        %1588 = vmatpush.msra.mxu0 %v849
        %1589 = vmatpush.msra.mxu0 %v845
        %1590 = vmatpush.msra.mxu0 %v841
        %1591 = vmatmul.f32.gmra.mxu0 %v766
        %v1592 = vpop.f32.mrf.mxu0
        %v1593 = vadd.f32 %v1573, %v1592
        %1594 = vdwg.mxu0
        %1595 = vmatpush.msra.mxu0 %v965
        %1596 = vmatpush.msra.mxu0 %v961
        %1597 = vmatpush.msra.mxu0 %v957
        %1598 = vmatpush.msra.mxu0 %v953
        %1599 = vmatpush.msra.mxu0 %v949
        %1600 = vmatpush.msra.mxu0 %v945
        %1601 = vmatpush.msra.mxu0 %v941
        %1602 = vmatpush.msra.mxu0 %v937
        %1603 = vmatpush.msra.mxu0 %v933
        %1604 = vmatpush.msra.mxu0 %v929
        %1605 = vmatpush.msra.mxu0 %v925
        %1606 = vmatpush.msra.mxu0 %v921
        %1607 = vmatpush.msra.mxu0 %v917
        %1608 = vmatpush.msra.mxu0 %v913
        %1609 = vmatpush.msra.mxu0 %v909
        %1610 = vmatpush.msra.mxu0 %v905
        %1611 = vmatmul.f32.gmra.mxu0 %v767
        %v1612 = vpop.f32.mrf.mxu0
        %v1613 = vadd.f32 %v1593, %v1612
        %1614 = vdwg.mxu0
        %1615 = vmatpush.msra.mxu0 %v1029
        %1616 = vmatpush.msra.mxu0 %v1025
        %1617 = vmatpush.msra.mxu0 %v1021
        %1618 = vmatpush.msra.mxu0 %v1017
        %1619 = vmatpush.msra.mxu0 %v1013
        %1620 = vmatpush.msra.mxu0 %v1009
        %1621 = vmatpush.msra.mxu0 %v1005
        %1622 = vmatpush.msra.mxu0 %v1001
        %1623 = vmatpush.msra.mxu0 %v997
        %1624 = vmatpush.msra.mxu0 %v993
        %1625 = vmatpush.msra.mxu0 %v989
        %1626 = vmatpush.msra.mxu0 %v985
        %1627 = vmatpush.msra.mxu0 %v981
        %1628 = vmatpush.msra.mxu0 %v977
        %1629 = vmatpush.msra.mxu0 %v973
        %1630 = vmatpush.msra.mxu0 %v969
        %1631 = vmatmul.f32.gmra.mxu0 %v768
        %v1632 = vpop.f32.mrf.mxu0
        %v1633 = vadd.f32 %v1613, %v1632
        %1634 = vdwg.mxu0
        %1635 = vmatpush.msra.mxu0 %v1093
        %1636 = vmatpush.msra.mxu0 %v1089
        %1637 = vmatpush.msra.mxu0 %v1085
        %1638 = vmatpush.msra.mxu0 %v1081
        %1639 = vmatpush.msra.mxu0 %v1077
        %1640 = vmatpush.msra.mxu0 %v1073
        %1641 = vmatpush.msra.mxu0 %v1069
        %1642 = vmatpush.msra.mxu0 %v1065
        %1643 = vmatpush.msra.mxu0 %v1061
        %1644 = vmatpush.msra.mxu0 %v1057
        %1645 = vmatpush.msra.mxu0 %v1053
        %1646 = vmatpush.msra.mxu0 %v1049
        %1647 = vmatpush.msra.mxu0 %v1045
        %1648 = vmatpush.msra.mxu0 %v1041
        %1649 = vmatpush.msra.mxu0 %v1037
        %1650 = vmatpush.msra.mxu0 %v1033
        %1651 = vmatmul.f32.gmra.mxu0 %v769
        %v1652 = vpop.f32.mrf.mxu0
        %v1653 = vadd.f32 %v1633, %v1652
        %1654 = vdwg.mxu0
        %1655 = vmatpush.msra.mxu0 %v1157
        %1656 = vmatpush.msra.mxu0 %v1153
        %1657 = vmatpush.msra.mxu0 %v1149
        %1658 = vmatpush.msra.mxu0 %v1145
        %1659 = vmatpush.msra.mxu0 %v1141
        %1660 = vmatpush.msra.mxu0 %v1137
        %1661 = vmatpush.msra.mxu0 %v1133
        %1662 = vmatpush.msra.mxu0 %v1129
        %1663 = vmatpush.msra.mxu0 %v1125
        %1664 = vmatpush.msra.mxu0 %v1121
        %1665 = vmatpush.msra.mxu0 %v1117
        %1666 = vmatpush.msra.mxu0 %v1113
        %1667 = vmatpush.msra.mxu0 %v1109
        %1668 = vmatpush.msra.mxu0 %v1105
        %1669 = vmatpush.msra.mxu0 %v1101
        %1670 = vmatpush.msra.mxu0 %v1097
        %1671 = vmatmul.f32.gmra.mxu0 %v770
        %v1672 = vpop.f32.mrf.mxu0
        %v1673 = vadd.f32 %v1653, %v1672
        %1674 = vdwg.mxu0
        %1675 = vmatpush.msra.mxu0 %v1221
        %1676 = vmatpush.msra.mxu0 %v1217
        %1677 = vmatpush.msra.mxu0 %v1213
        %1678 = vmatpush.msra.mxu0 %v1209
        %1679 = vmatpush.msra.mxu0 %v1205
        %1680 = vmatpush.msra.mxu0 %v1201
        %1681 = vmatpush.msra.mxu0 %v1197
        %1682 = vmatpush.msra.mxu0 %v1193
        %1683 = vmatpush.msra.mxu0 %v1189
        %1684 = vmatpush.msra.mxu0 %v1185
        %1685 = vmatpush.msra.mxu0 %v1181
        %1686 = vmatpush.msra.mxu0 %v1177
        %1687 = vmatpush.msra.mxu0 %v1173
        %1688 = vmatpush.msra.mxu0 %v1169
        %1689 = vmatpush.msra.mxu0 %v1165
        %1690 = vmatpush.msra.mxu0 %v1161
        %1691 = vmatmul.f32.gmra.mxu0 %v771
        %v1692 = vpop.f32.mrf.mxu0
        %v1693 = vadd.f32 %v1673, %v1692
        %1694 = vdwg.mxu0
        %1695 = vmatpush.msra.mxu0 %v1285
        %1696 = vmatpush.msra.mxu0 %v1281
        %1697 = vmatpush.msra.mxu0 %v1277
        %1698 = vmatpush.msra.mxu0 %v1273
        %1699 = vmatpush.msra.mxu0 %v1269
        %1700 = vmatpush.msra.mxu0 %v1265
        %1701 = vmatpush.msra.mxu0 %v1261
        %1702 = vmatpush.msra.mxu0 %v1257
        %1703 = vmatpush.msra.mxu0 %v1253
        %1704 = vmatpush.msra.mxu0 %v1249
        %1705 = vmatpush.msra.mxu0 %v1245
        %1706 = vmatpush.msra.mxu0 %v1241
        %1707 = vmatpush.msra.mxu0 %v1237
        %1708 = vmatpush.msra.mxu0 %v1233
        %1709 = vmatpush.msra.mxu0 %v1229
        %1710 = vmatpush.msra.mxu0 %v1225
        %1711 = vmatmul.f32.gmra.mxu0 %v772
        %v1712 = vpop.f32.mrf.mxu0
        %v1713 = vadd.f32 %v1693, %v1712
        %1714 = vdwg.mxu0
        %1715 = vmatpush.msra.mxu0 %v1349
        %1716 = vmatpush.msra.mxu0 %v1345
        %1717 = vmatpush.msra.mxu0 %v1341
        %1718 = vmatpush.msra.mxu0 %v1337
        %1719 = vmatpush.msra.mxu0 %v1333
        %1720 = vmatpush.msra.mxu0 %v1329
        %1721 = vmatpush.msra.mxu0 %v1325
        %1722 = vmatpush.msra.mxu0 %v1321
        %1723 = vmatpush.msra.mxu0 %v1317
        %1724 = vmatpush.msra.mxu0 %v1313
        %1725 = vmatpush.msra.mxu0 %v1309
        %1726 = vmatpush.msra.mxu0 %v1305
        %1727 = vmatpush.msra.mxu0 %v1301
        %1728 = vmatpush.msra.mxu0 %v1297
        %1729 = vmatpush.msra.mxu0 %v1293
        %1730 = vmatpush.msra.mxu0 %v1289
        %1731 = vmatmul.f32.gmra.mxu0 %v773
        %v1732 = vpop.f32.mrf.mxu0
        %v1733 = vadd.f32 %v1713, %v1732
        %1734 = vdwg.mxu0
        %1735 = vmatpush.msra.mxu0 %v1413
        %1736 = vmatpush.msra.mxu0 %v1409
        %1737 = vmatpush.msra.mxu0 %v1405
        %1738 = vmatpush.msra.mxu0 %v1401
        %1739 = vmatpush.msra.mxu0 %v1397
        %1740 = vmatpush.msra.mxu0 %v1393
        %1741 = vmatpush.msra.mxu0 %v1389
        %1742 = vmatpush.msra.mxu0 %v1385
        %1743 = vmatpush.msra.mxu0 %v1381
        %1744 = vmatpush.msra.mxu0 %v1377
        %1745 = vmatpush.msra.mxu0 %v1373
        %1746 = vmatpush.msra.mxu0 %v1369
        %1747 = vmatpush.msra.mxu0 %v1365
        %1748 = vmatpush.msra.mxu0 %v1361
        %1749 = vmatpush.msra.mxu0 %v1357
        %1750 = vmatpush.msra.mxu0 %v1353
        %1751 = vmatmul.f32.gmra.mxu0 %v774
        %v1752 = vpop.f32.mrf.mxu0
        %v1753 = vadd.f32 %v1733, %v1752
        %1754 = vdwg.mxu0
        %1755 = vmatpush.msra.mxu0 %v1477
        %1756 = vmatpush.msra.mxu0 %v1473
        %1757 = vmatpush.msra.mxu0 %v1469
        %1758 = vmatpush.msra.mxu0 %v1465
        %1759 = vmatpush.msra.mxu0 %v1461
        %1760 = vmatpush.msra.mxu0 %v1457
        %1761 = vmatpush.msra.mxu0 %v1453
        %1762 = vmatpush.msra.mxu0 %v1449
        %1763 = vmatpush.msra.mxu0 %v1445
        %1764 = vmatpush.msra.mxu0 %v1441
        %1765 = vmatpush.msra.mxu0 %v1437
        %1766 = vmatpush.msra.mxu0 %v1433
        %1767 = vmatpush.msra.mxu0 %v1429
        %1768 = vmatpush.msra.mxu0 %v1425
        %1769 = vmatpush.msra.mxu0 %v1421
        %1770 = vmatpush.msra.mxu0 %v1417
        %1771 = vmatmul.f32.gmra.mxu0 %v775
        %v1772 = vpop.f32.mrf.mxu0
        %v1773 = vadd.f32 %v1753, %v1772
        %1774 = vdwg.mxu0
        %1775 = vmatpush.msra.mxu0 %v1541
        %1776 = vmatpush.msra.mxu0 %v1537
        %1777 = vmatpush.msra.mxu0 %v1533
        %1778 = vmatpush.msra.mxu0 %v1529
        %1779 = vmatpush.msra.mxu0 %v1525
        %1780 = vmatpush.msra.mxu0 %v1521
        %1781 = vmatpush.msra.mxu0 %v1517
        %1782 = vmatpush.msra.mxu0 %v1513
        %1783 = vmatpush.msra.mxu0 %v1509
        %1784 = vmatpush.msra.mxu0 %v1505
        %1785 = vmatpush.msra.mxu0 %v1501
        %1786 = vmatpush.msra.mxu0 %v1497
        %1787 = vmatpush.msra.mxu0 %v1493
        %1788 = vmatpush.msra.mxu0 %v1489
        %1789 = vmatpush.msra.mxu0 %v1485
        %1790 = vmatpush.msra.mxu0 %v1481
        %1791 = vmatmul.f32.gmra.mxu0 %v776
        %v1792 = vpop.f32.mrf.mxu0
        %v1793 = vadd.f32 %v1773, %v1792
        %1794 = vdwg.mxu0
        %1795 = vmatpush.msra.mxu0 %v838
        %1796 = vmatpush.msra.mxu0 %v834
        %1797 = vmatpush.msra.mxu0 %v830
        %1798 = vmatpush.msra.mxu0 %v826
        %1799 = vmatpush.msra.mxu0 %v822
        %1800 = vmatpush.msra.mxu0 %v818
        %1801 = vmatpush.msra.mxu0 %v814
        %1802 = vmatpush.msra.mxu0 %v810
        %1803 = vmatpush.msra.mxu0 %v806
        %1804 = vmatpush.msra.mxu0 %v802
        %1805 = vmatpush.msra.mxu0 %v798
        %1806 = vmatpush.msra.mxu0 %v794
        %1807 = vmatpush.msra.mxu0 %v790
        %1808 = vmatpush.msra.mxu0 %v786
        %1809 = vmatpush.msra.mxu0 %v782
        %1810 = vmatpush.msra.mxu0 %v778
        %1811 = vmatmul.f32.gmra.mxu0 %v765
        %v1812 = vpop.f32.mrf.mxu0
        %v1813 = vadd.f32 %v1548, %v1812
        %1814 = vdwg.mxu0
        %1815 = vmatpush.msra.mxu0 %v902
        %1816 = vmatpush.msra.mxu0 %v898
        %1817 = vmatpush.msra.mxu0 %v894
        %1818 = vmatpush.msra.mxu0 %v890
        %1819 = vmatpush.msra.mxu0 %v886
        %1820 = vmatpush.msra.mxu0 %v882
        %1821 = vmatpush.msra.mxu0 %v878
        %1822 = vmatpush.msra.mxu0 %v874
        %1823 = vmatpush.msra.mxu0 %v870
        %1824 = vmatpush.msra.mxu0 %v866
        %1825 = vmatpush.msra.mxu0 %v862
        %1826 = vmatpush.msra.mxu0 %v858
        %1827 = vmatpush.msra.mxu0 %v854
        %1828 = vmatpush.msra.mxu0 %v850
        %1829 = vmatpush.msra.mxu0 %v846
        %1830 = vmatpush.msra.mxu0 %v842
        %1831 = vmatmul.f32.gmra.mxu0 %v766
        %v1832 = vpop.f32.mrf.mxu0
        %v1833 = vadd.f32 %v1813, %v1832
        %1834 = vdwg.mxu0
        %1835 = vmatpush.msra.mxu0 %v966
        %1836 = vmatpush.msra.mxu0 %v962
        %1837 = vmatpush.msra.mxu0 %v958
        %1838 = vmatpush.msra.mxu0 %v954
        %1839 = vmatpush.msra.mxu0 %v950
        %1840 = vmatpush.msra.mxu0 %v946
        %1841 = vmatpush.msra.mxu0 %v942
        %1842 = vmatpush.msra.mxu0 %v938
        %1843 = vmatpush.msra.mxu0 %v934
        %1844 = vmatpush.msra.mxu0 %v930
        %1845 = vmatpush.msra.mxu0 %v926
        %1846 = vmatpush.msra.mxu0 %v922
        %1847 = vmatpush.msra.mxu0 %v918
        %1848 = vmatpush.msra.mxu0 %v914
        %1849 = vmatpush.msra.mxu0 %v910
        %1850 = vmatpush.msra.mxu0 %v906
        %1851 = vmatmul.f32.gmra.mxu0 %v767
        %v1852 = vpop.f32.mrf.mxu0
        %v1853 = vadd.f32 %v1833, %v1852
        %1854 = vdwg.mxu0
        %1855 = vmatpush.msra.mxu0 %v1030
        %1856 = vmatpush.msra.mxu0 %v1026
        %1857 = vmatpush.msra.mxu0 %v1022
        %1858 = vmatpush.msra.mxu0 %v1018
        %1859 = vmatpush.msra.mxu0 %v1014
        %1860 = vmatpush.msra.mxu0 %v1010
        %1861 = vmatpush.msra.mxu0 %v1006
        %1862 = vmatpush.msra.mxu0 %v1002
        %1863 = vmatpush.msra.mxu0 %v998
        %1864 = vmatpush.msra.mxu0 %v994
        %1865 = vmatpush.msra.mxu0 %v990
        %1866 = vmatpush.msra.mxu0 %v986
        %1867 = vmatpush.msra.mxu0 %v982
        %1868 = vmatpush.msra.mxu0 %v978
        %1869 = vmatpush.msra.mxu0 %v974
        %1870 = vmatpush.msra.mxu0 %v970
        %1871 = vmatmul.f32.gmra.mxu0 %v768
        %v1872 = vpop.f32.mrf.mxu0
        %v1873 = vadd.f32 %v1853, %v1872
        %1874 = vdwg.mxu0
        %1875 = vmatpush.msra.mxu0 %v1094
        %1876 = vmatpush.msra.mxu0 %v1090
        %1877 = vmatpush.msra.mxu0 %v1086
        %1878 = vmatpush.msra.mxu0 %v1082
        %1879 = vmatpush.msra.mxu0 %v1078
        %1880 = vmatpush.msra.mxu0 %v1074
        %1881 = vmatpush.msra.mxu0 %v1070
        %1882 = vmatpush.msra.mxu0 %v1066
        %1883 = vmatpush.msra.mxu0 %v1062
        %1884 = vmatpush.msra.mxu0 %v1058
        %1885 = vmatpush.msra.mxu0 %v1054
        %1886 = vmatpush.msra.mxu0 %v1050
        %1887 = vmatpush.msra.mxu0 %v1046
        %1888 = vmatpush.msra.mxu0 %v1042
        %1889 = vmatpush.msra.mxu0 %v1038
        %1890 = vmatpush.msra.mxu0 %v1034
        %1891 = vmatmul.f32.gmra.mxu0 %v769
        %v1892 = vpop.f32.mrf.mxu0
        %v1893 = vadd.f32 %v1873, %v1892
        %1894 = vdwg.mxu0
        %1895 = vmatpush.msra.mxu0 %v1158
        %1896 = vmatpush.msra.mxu0 %v1154
        %1897 = vmatpush.msra.mxu0 %v1150
        %1898 = vmatpush.msra.mxu0 %v1146
        %1899 = vmatpush.msra.mxu0 %v1142
        %1900 = vmatpush.msra.mxu0 %v1138
        %1901 = vmatpush.msra.mxu0 %v1134
        %1902 = vmatpush.msra.mxu0 %v1130
        %1903 = vmatpush.msra.mxu0 %v1126
        %1904 = vmatpush.msra.mxu0 %v1122
        %1905 = vmatpush.msra.mxu0 %v1118
        %1906 = vmatpush.msra.mxu0 %v1114
        %1907 = vmatpush.msra.mxu0 %v1110
        %1908 = vmatpush.msra.mxu0 %v1106
        %1909 = vmatpush.msra.mxu0 %v1102
        %1910 = vmatpush.msra.mxu0 %v1098
        %1911 = vmatmul.f32.gmra.mxu0 %v770
        %v1912 = vpop.f32.mrf.mxu0
        %v1913 = vadd.f32 %v1893, %v1912
        %1914 = vdwg.mxu0
        %1915 = vmatpush.msra.mxu0 %v1222
        %1916 = vmatpush.msra.mxu0 %v1218
        %1917 = vmatpush.msra.mxu0 %v1214
        %1918 = vmatpush.msra.mxu0 %v1210
        %1919 = vmatpush.msra.mxu0 %v1206
        %1920 = vmatpush.msra.mxu0 %v1202
        %1921 = vmatpush.msra.mxu0 %v1198
        %1922 = vmatpush.msra.mxu0 %v1194
        %1923 = vmatpush.msra.mxu0 %v1190
        %1924 = vmatpush.msra.mxu0 %v1186
        %1925 = vmatpush.msra.mxu0 %v1182
        %1926 = vmatpush.msra.mxu0 %v1178
        %1927 = vmatpush.msra.mxu0 %v1174
        %1928 = vmatpush.msra.mxu0 %v1170
        %1929 = vmatpush.msra.mxu0 %v1166
        %1930 = vmatpush.msra.mxu0 %v1162
        %1931 = vmatmul.f32.gmra.mxu0 %v771
        %v1932 = vpop.f32.mrf.mxu0
        %v1933 = vadd.f32 %v1913, %v1932
        %1934 = vdwg.mxu0
        %1935 = vmatpush.msra.mxu0 %v1286
        %1936 = vmatpush.msra.mxu0 %v1282
        %1937 = vmatpush.msra.mxu0 %v1278
        %1938 = vmatpush.msra.mxu0 %v1274
        %1939 = vmatpush.msra.mxu0 %v1270
        %1940 = vmatpush.msra.mxu0 %v1266
        %1941 = vmatpush.msra.mxu0 %v1262
        %1942 = vmatpush.msra.mxu0 %v1258
        %1943 = vmatpush.msra.mxu0 %v1254
        %1944 = vmatpush.msra.mxu0 %v1250
        %1945 = vmatpush.msra.mxu0 %v1246
        %1946 = vmatpush.msra.mxu0 %v1242
        %1947 = vmatpush.msra.mxu0 %v1238
        %1948 = vmatpush.msra.mxu0 %v1234
        %1949 = vmatpush.msra.mxu0 %v1230
        %1950 = vmatpush.msra.mxu0 %v1226
        %1951 = vmatmul.f32.gmra.mxu0 %v772
        %v1952 = vpop.f32.mrf.mxu0
        %v1953 = vadd.f32 %v1933, %v1952
        %1954 = vdwg.mxu0
        %1955 = vmatpush.msra.mxu0 %v1350
        %1956 = vmatpush.msra.mxu0 %v1346
        %1957 = vmatpush.msra.mxu0 %v1342
        %1958 = vmatpush.msra.mxu0 %v1338
        %1959 = vmatpush.msra.mxu0 %v1334
        %1960 = vmatpush.msra.mxu0 %v1330
        %1961 = vmatpush.msra.mxu0 %v1326
        %1962 = vmatpush.msra.mxu0 %v1322
        %1963 = vmatpush.msra.mxu0 %v1318
        %1964 = vmatpush.msra.mxu0 %v1314
        %1965 = vmatpush.msra.mxu0 %v1310
        %1966 = vmatpush.msra.mxu0 %v1306
        %1967 = vmatpush.msra.mxu0 %v1302
        %1968 = vmatpush.msra.mxu0 %v1298
        %1969 = vmatpush.msra.mxu0 %v1294
        %1970 = vmatpush.msra.mxu0 %v1290
        %1971 = vmatmul.f32.gmra.mxu0 %v773
        %v1972 = vpop.f32.mrf.mxu0
        %v1973 = vadd.f32 %v1953, %v1972
        %1974 = vdwg.mxu0
        %1975 = vmatpush.msra.mxu0 %v1414
        %1976 = vmatpush.msra.mxu0 %v1410
        %1977 = vmatpush.msra.mxu0 %v1406
        %1978 = vmatpush.msra.mxu0 %v1402
        %1979 = vmatpush.msra.mxu0 %v1398
        %1980 = vmatpush.msra.mxu0 %v1394
        %1981 = vmatpush.msra.mxu0 %v1390
        %1982 = vmatpush.msra.mxu0 %v1386
        %1983 = vmatpush.msra.mxu0 %v1382
        %1984 = vmatpush.msra.mxu0 %v1378
        %1985 = vmatpush.msra.mxu0 %v1374
        %1986 = vmatpush.msra.mxu0 %v1370
        %1987 = vmatpush.msra.mxu0 %v1366
        %1988 = vmatpush.msra.mxu0 %v1362
        %1989 = vmatpush.msra.mxu0 %v1358
        %1990 = vmatpush.msra.mxu0 %v1354
        %1991 = vmatmul.f32.gmra.mxu0 %v774
        %v1992 = vpop.f32.mrf.mxu0
        %v1993 = vadd.f32 %v1973, %v1992
        %1994 = vdwg.mxu0
        %1995 = vmatpush.msra.mxu0 %v1478
        %1996 = vmatpush.msra.mxu0 %v1474
        %1997 = vmatpush.msra.mxu0 %v1470
        %1998 = vmatpush.msra.mxu0 %v1466
        %1999 = vmatpush.msra.mxu0 %v1462
        %2000 = vmatpush.msra.mxu0 %v1458
        %2001 = vmatpush.msra.mxu0 %v1454
        %2002 = vmatpush.msra.mxu0 %v1450
        %2003 = vmatpush.msra.mxu0 %v1446
        %2004 = vmatpush.msra.mxu0 %v1442
        %2005 = vmatpush.msra.mxu0 %v1438
        %2006 = vmatpush.msra.mxu0 %v1434
        %2007 = vmatpush.msra.mxu0 %v1430
        %2008 = vmatpush.msra.mxu0 %v1426
        %2009 = vmatpush.msra.mxu0 %v1422
        %2010 = vmatpush.msra.mxu0 %v1418
        %2011 = vmatmul.f32.gmra.mxu0 %v775
        %v2012 = vpop.f32.mrf.mxu0
        %v2013 = vadd.f32 %v1993, %v2012
        %2014 = vdwg.mxu0
        %2015 = vmatpush.msra.mxu0 %v1542
        %2016 = vmatpush.msra.mxu0 %v1538
        %2017 = vmatpush.msra.mxu0 %v1534
        %2018 = vmatpush.msra.mxu0 %v1530
        %2019 = vmatpush.msra.mxu0 %v1526
        %2020 = vmatpush.msra.mxu0 %v1522
        %2021 = vmatpush.msra.mxu0 %v1518
        %2022 = vmatpush.msra.mxu0 %v1514
        %2023 = vmatpush.msra.mxu0 %v1510
        %2024 = vmatpush.msra.mxu0 %v1506
        %2025 = vmatpush.msra.mxu0 %v1502
        %2026 = vmatpush.msra.mxu0 %v1498
        %2027 = vmatpush.msra.mxu0 %v1494
        %2028 = vmatpush.msra.mxu0 %v1490
        %2029 = vmatpush.msra.mxu0 %v1486
        %2030 = vmatpush.msra.mxu0 %v1482
        %2031 = vmatmul.f32.gmra.mxu0 %v776
        %v2032 = vpop.f32.mrf.mxu0
        %v2033 = vadd.f32 %v2013, %v2032
        %2034 = vdwg.mxu0
        %2035 = vmatpush.msra.mxu0 %v839
        %2036 = vmatpush.msra.mxu0 %v835
        %2037 = vmatpush.msra.mxu0 %v831
        %2038 = vmatpush.msra.mxu0 %v827
        %2039 = vmatpush.msra.mxu0 %v823
        %2040 = vmatpush.msra.mxu0 %v819
        %2041 = vmatpush.msra.mxu0 %v815
        %2042 = vmatpush.msra.mxu0 %v811
        %2043 = vmatpush.msra.mxu0 %v807
        %2044 = vmatpush.msra.mxu0 %v803
        %2045 = vmatpush.msra.mxu0 %v799
        %2046 = vmatpush.msra.mxu0 %v795
        %2047 = vmatpush.msra.mxu0 %v791
        %2048 = vmatpush.msra.mxu0 %v787
        %2049 = vmatpush.msra.mxu0 %v783
        %2050 = vmatpush.msra.mxu0 %v779
        %2051 = vmatmul.f32.gmra.mxu0 %v765
        %v2052 = vpop.f32.mrf.mxu0
        %v2053 = vadd.f32 %v1549, %v2052
        %2054 = vdwg.mxu0
        %2055 = vmatpush.msra.mxu0 %v903
        %2056 = vmatpush.msra.mxu0 %v899
        %2057 = vmatpush.msra.mxu0 %v895
        %2058 = vmatpush.msra.mxu0 %v891
        %2059 = vmatpush.msra.mxu0 %v887
        %2060 = vmatpush.msra.mxu0 %v883
        %2061 = vmatpush.msra.mxu0 %v879
        %2062 = vmatpush.msra.mxu0 %v875
        %2063 = vmatpush.msra.mxu0 %v871
        %2064 = vmatpush.msra.mxu0 %v867
        %2065 = vmatpush.msra.mxu0 %v863
        %2066 = vmatpush.msra.mxu0 %v859
        %2067 = vmatpush.msra.mxu0 %v855
        %2068 = vmatpush.msra.mxu0 %v851
        %2069 = vmatpush.msra.mxu0 %v847
        %2070 = vmatpush.msra.mxu0 %v843
        %2071 = vmatmul.f32.gmra.mxu0 %v766
        %v2072 = vpop.f32.mrf.mxu0
        %v2073 = vadd.f32 %v2053, %v2072
        %2074 = vdwg.mxu0
        %2075 = vmatpush.msra.mxu0 %v967
        %2076 = vmatpush.msra.mxu0 %v963
        %2077 = vmatpush.msra.mxu0 %v959
        %2078 = vmatpush.msra.mxu0 %v955
        %2079 = vmatpush.msra.mxu0 %v951
        %2080 = vmatpush.msra.mxu0 %v947
        %2081 = vmatpush.msra.mxu0 %v943
        %2082 = vmatpush.msra.mxu0 %v939
        %2083 = vmatpush.msra.mxu0 %v935
        %2084 = vmatpush.msra.mxu0 %v931
        %2085 = vmatpush.msra.mxu0 %v927
        %2086 = vmatpush.msra.mxu0 %v923
        %2087 = vmatpush.msra.mxu0 %v919
        %2088 = vmatpush.msra.mxu0 %v915
        %2089 = vmatpush.msra.mxu0 %v911
        %2090 = vmatpush.msra.mxu0 %v907
        %2091 = vmatmul.f32.gmra.mxu0 %v767
        %v2092 = vpop.f32.mrf.mxu0
        %v2093 = vadd.f32 %v2073, %v2092
        %2094 = vdwg.mxu0
        %2095 = vmatpush.msra.mxu0 %v1031
        %2096 = vmatpush.msra.mxu0 %v1027
        %2097 = vmatpush.msra.mxu0 %v1023
        %2098 = vmatpush.msra.mxu0 %v1019
        %2099 = vmatpush.msra.mxu0 %v1015
        %2100 = vmatpush.msra.mxu0 %v1011
        %2101 = vmatpush.msra.mxu0 %v1007
        %2102 = vmatpush.msra.mxu0 %v1003
        %2103 = vmatpush.msra.mxu0 %v999
        %2104 = vmatpush.msra.mxu0 %v995
        %2105 = vmatpush.msra.mxu0 %v991
        %2106 = vmatpush.msra.mxu0 %v987
        %2107 = vmatpush.msra.mxu0 %v983
        %2108 = vmatpush.msra.mxu0 %v979
        %2109 = vmatpush.msra.mxu0 %v975
        %2110 = vmatpush.msra.mxu0 %v971
        %2111 = vmatmul.f32.gmra.mxu0 %v768
        %v2112 = vpop.f32.mrf.mxu0
        %v2113 = vadd.f32 %v2093, %v2112
        %2114 = vdwg.mxu0
        %2115 = vmatpush.msra.mxu0 %v1095
        %2116 = vmatpush.msra.mxu0 %v1091
        %2117 = vmatpush.msra.mxu0 %v1087
        %2118 = vmatpush.msra.mxu0 %v1083
        %2119 = vmatpush.msra.mxu0 %v1079
        %2120 = vmatpush.msra.mxu0 %v1075
        %2121 = vmatpush.msra.mxu0 %v1071
        %2122 = vmatpush.msra.mxu0 %v1067
        %2123 = vmatpush.msra.mxu0 %v1063
        %2124 = vmatpush.msra.mxu0 %v1059
        %2125 = vmatpush.msra.mxu0 %v1055
        %2126 = vmatpush.msra.mxu0 %v1051
        %2127 = vmatpush.msra.mxu0 %v1047
        %2128 = vmatpush.msra.mxu0 %v1043
        %2129 = vmatpush.msra.mxu0 %v1039
        %2130 = vmatpush.msra.mxu0 %v1035
        %2131 = vmatmul.f32.gmra.mxu0 %v769
        %v2132 = vpop.f32.mrf.mxu0
        %v2133 = vadd.f32 %v2113, %v2132
        %2134 = vdwg.mxu0
        %2135 = vmatpush.msra.mxu0 %v1159
        %2136 = vmatpush.msra.mxu0 %v1155
        %2137 = vmatpush.msra.mxu0 %v1151
        %2138 = vmatpush.msra.mxu0 %v1147
        %2139 = vmatpush.msra.mxu0 %v1143
        %2140 = vmatpush.msra.mxu0 %v1139
        %2141 = vmatpush.msra.mxu0 %v1135
        %2142 = vmatpush.msra.mxu0 %v1131
        %2143 = vmatpush.msra.mxu0 %v1127
        %2144 = vmatpush.msra.mxu0 %v1123
        %2145 = vmatpush.msra.mxu0 %v1119
        %2146 = vmatpush.msra.mxu0 %v1115
        %2147 = vmatpush.msra.mxu0 %v1111
        %2148 = vmatpush.msra.mxu0 %v1107
        %2149 = vmatpush.msra.mxu0 %v1103
        %2150 = vmatpush.msra.mxu0 %v1099
        %2151 = vmatmul.f32.gmra.mxu0 %v770
        %v2152 = vpop.f32.mrf.mxu0
        %v2153 = vadd.f32 %v2133, %v2152
        %2154 = vdwg.mxu0
        %2155 = vmatpush.msra.mxu0 %v1223
        %2156 = vmatpush.msra.mxu0 %v1219
        %2157 = vmatpush.msra.mxu0 %v1215
        %2158 = vmatpush.msra.mxu0 %v1211
        %2159 = vmatpush.msra.mxu0 %v1207
        %2160 = vmatpush.msra.mxu0 %v1203
        %2161 = vmatpush.msra.mxu0 %v1199
        %2162 = vmatpush.msra.mxu0 %v1195
        %2163 = vmatpush.msra.mxu0 %v1191
        %2164 = vmatpush.msra.mxu0 %v1187
        %2165 = vmatpush.msra.mxu0 %v1183
        %2166 = vmatpush.msra.mxu0 %v1179
        %2167 = vmatpush.msra.mxu0 %v1175
        %2168 = vmatpush.msra.mxu0 %v1171
        %2169 = vmatpush.msra.mxu0 %v1167
        %2170 = vmatpush.msra.mxu0 %v1163
        %2171 = vmatmul.f32.gmra.mxu0 %v771
        %v2172 = vpop.f32.mrf.mxu0
        %v2173 = vadd.f32 %v2153, %v2172
        %2174 = vdwg.mxu0
        %2175 = vmatpush.msra.mxu0 %v1287
        %2176 = vmatpush.msra.mxu0 %v1283
        %2177 = vmatpush.msra.mxu0 %v1279
        %2178 = vmatpush.msra.mxu0 %v1275
        %2179 = vmatpush.msra.mxu0 %v1271
        %2180 = vmatpush.msra.mxu0 %v1267
        %2181 = vmatpush.msra.mxu0 %v1263
        %2182 = vmatpush.msra.mxu0 %v1259
        %2183 = vmatpush.msra.mxu0 %v1255
        %2184 = vmatpush.msra.mxu0 %v1251
        %2185 = vmatpush.msra.mxu0 %v1247
        %2186 = vmatpush.msra.mxu0 %v1243
        %2187 = vmatpush.msra.mxu0 %v1239
        %2188 = vmatpush.msra.mxu0 %v1235
        %2189 = vmatpush.msra.mxu0 %v1231
        %2190 = vmatpush.msra.mxu0 %v1227
        %2191 = vmatmul.f32.gmra.mxu0 %v772
        %v2192 = vpop.f32.mrf.mxu0
        %v2193 = vadd.f32 %v2173, %v2192
        %2194 = vdwg.mxu0
        %2195 = vmatpush.msra.mxu0 %v1351
        %2196 = vmatpush.msra.mxu0 %v1347
        %2197 = vmatpush.msra.mxu0 %v1343
        %2198 = vmatpush.msra.mxu0 %v1339
        %2199 = vmatpush.msra.mxu0 %v1335
        %2200 = vmatpush.msra.mxu0 %v1331
        %2201 = vmatpush.msra.mxu0 %v1327
        %2202 = vmatpush.msra.mxu0 %v1323
        %2203 = vmatpush.msra.mxu0 %v1319
        %2204 = vmatpush.msra.mxu0 %v1315
        %2205 = vmatpush.msra.mxu0 %v1311
        %2206 = vmatpush.msra.mxu0 %v1307
        %2207 = vmatpush.msra.mxu0 %v1303
        %2208 = vmatpush.msra.mxu0 %v1299
        %2209 = vmatpush.msra.mxu0 %v1295
        %2210 = vmatpush.msra.mxu0 %v1291
        %2211 = vmatmul.f32.gmra.mxu0 %v773
        %v2212 = vpop.f32.mrf.mxu0
        %v2213 = vadd.f32 %v2193, %v2212
        %2214 = vdwg.mxu0
        %2215 = vmatpush.msra.mxu0 %v1415
        %2216 = vmatpush.msra.mxu0 %v1411
        %2217 = vmatpush.msra.mxu0 %v1407
        %2218 = vmatpush.msra.mxu0 %v1403
        %2219 = vmatpush.msra.mxu0 %v1399
        %2220 = vmatpush.msra.mxu0 %v1395
        %2221 = vmatpush.msra.mxu0 %v1391
        %2222 = vmatpush.msra.mxu0 %v1387
        %2223 = vmatpush.msra.mxu0 %v1383
        %2224 = vmatpush.msra.mxu0 %v1379
        %2225 = vmatpush.msra.mxu0 %v1375
        %2226 = vmatpush.msra.mxu0 %v1371
        %2227 = vmatpush.msra.mxu0 %v1367
        %2228 = vmatpush.msra.mxu0 %v1363
        %2229 = vmatpush.msra.mxu0 %v1359
        %2230 = vmatpush.msra.mxu0 %v1355
        %2231 = vmatmul.f32.gmra.mxu0 %v774
        %v2232 = vpop.f32.mrf.mxu0
        %v2233 = vadd.f32 %v2213, %v2232
        %2234 = vdwg.mxu0
        %2235 = vmatpush.msra.mxu0 %v1479
        %2236 = vmatpush.msra.mxu0 %v1475
        %2237 = vmatpush.msra.mxu0 %v1471
        %2238 = vmatpush.msra.mxu0 %v1467
        %2239 = vmatpush.msra.mxu0 %v1463
        %2240 = vmatpush.msra.mxu0 %v1459
        %2241 = vmatpush.msra.mxu0 %v1455
        %2242 = vmatpush.msra.mxu0 %v1451
        %2243 = vmatpush.msra.mxu0 %v1447
        %2244 = vmatpush.msra.mxu0 %v1443
        %2245 = vmatpush.msra.mxu0 %v1439
        %2246 = vmatpush.msra.mxu0 %v1435
        %2247 = vmatpush.msra.mxu0 %v1431
        %2248 = vmatpush.msra.mxu0 %v1427
        %2249 = vmatpush.msra.mxu0 %v1423
        %2250 = vmatpush.msra.mxu0 %v1419
        %2251 = vmatmul.f32.gmra.mxu0 %v775
        %v2252 = vpop.f32.mrf.mxu0
        %v2253 = vadd.f32 %v2233, %v2252
        %2254 = vdwg.mxu0
        %2255 = vmatpush.msra.mxu0 %v1543
        %2256 = vmatpush.msra.mxu0 %v1539
        %2257 = vmatpush.msra.mxu0 %v1535
        %2258 = vmatpush.msra.mxu0 %v1531
        %2259 = vmatpush.msra.mxu0 %v1527
        %2260 = vmatpush.msra.mxu0 %v1523
        %2261 = vmatpush.msra.mxu0 %v1519
        %2262 = vmatpush.msra.mxu0 %v1515
        %2263 = vmatpush.msra.mxu0 %v1511
        %2264 = vmatpush.msra.mxu0 %v1507
        %2265 = vmatpush.msra.mxu0 %v1503
        %2266 = vmatpush.msra.mxu0 %v1499
        %2267 = vmatpush.msra.mxu0 %v1495
        %2268 = vmatpush.msra.mxu0 %v1491
        %2269 = vmatpush.msra.mxu0 %v1487
        %2270 = vmatpush.msra.mxu0 %v1483
        %2271 = vmatmul.f32.gmra.mxu0 %v776
        %v2272 = vpop.f32.mrf.mxu0
        %v2273 = vadd.f32 %v2253, %v2272
        %2274 = vdwg.mxu0
        %2275 = vmatpush.msra.mxu0 %v840
        %2276 = vmatpush.msra.mxu0 %v836
        %2277 = vmatpush.msra.mxu0 %v832
        %2278 = vmatpush.msra.mxu0 %v828
        %2279 = vmatpush.msra.mxu0 %v824
        %2280 = vmatpush.msra.mxu0 %v820
        %2281 = vmatpush.msra.mxu0 %v816
        %2282 = vmatpush.msra.mxu0 %v812
        %2283 = vmatpush.msra.mxu0 %v808
        %2284 = vmatpush.msra.mxu0 %v804
        %2285 = vmatpush.msra.mxu0 %v800
        %2286 = vmatpush.msra.mxu0 %v796
        %2287 = vmatpush.msra.mxu0 %v792
        %2288 = vmatpush.msra.mxu0 %v788
        %2289 = vmatpush.msra.mxu0 %v784
        %2290 = vmatpush.msra.mxu0 %v780
        %2291 = vmatmul.f32.gmra.mxu0 %v765
        %v2292 = vpop.f32.mrf.mxu0
        %v2293 = vadd.f32 %v1550, %v2292
        %2294 = vdwg.mxu0
        %2295 = vmatpush.msra.mxu0 %v904
        %2296 = vmatpush.msra.mxu0 %v900
        %2297 = vmatpush.msra.mxu0 %v896
        %2298 = vmatpush.msra.mxu0 %v892
        %2299 = vmatpush.msra.mxu0 %v888
        %2300 = vmatpush.msra.mxu0 %v884
        %2301 = vmatpush.msra.mxu0 %v880
        %2302 = vmatpush.msra.mxu0 %v876
        %2303 = vmatpush.msra.mxu0 %v872
        %2304 = vmatpush.msra.mxu0 %v868
        %2305 = vmatpush.msra.mxu0 %v864
        %2306 = vmatpush.msra.mxu0 %v860
        %2307 = vmatpush.msra.mxu0 %v856
        %2308 = vmatpush.msra.mxu0 %v852
        %2309 = vmatpush.msra.mxu0 %v848
        %2310 = vmatpush.msra.mxu0 %v844
        %2311 = vmatmul.f32.gmra.mxu0 %v766
        %v2312 = vpop.f32.mrf.mxu0
        %v2313 = vadd.f32 %v2293, %v2312
        %2314 = vdwg.mxu0
        %2315 = vmatpush.msra.mxu0 %v968
        %2316 = vmatpush.msra.mxu0 %v964
        %2317 = vmatpush.msra.mxu0 %v960
        %2318 = vmatpush.msra.mxu0 %v956
        %2319 = vmatpush.msra.mxu0 %v952
        %2320 = vmatpush.msra.mxu0 %v948
        %2321 = vmatpush.msra.mxu0 %v944
        %2322 = vmatpush.msra.mxu0 %v940
        %2323 = vmatpush.msra.mxu0 %v936
        %2324 = vmatpush.msra.mxu0 %v932
        %2325 = vmatpush.msra.mxu0 %v928
        %2326 = vmatpush.msra.mxu0 %v924
        %2327 = vmatpush.msra.mxu0 %v920
        %2328 = vmatpush.msra.mxu0 %v916
        %2329 = vmatpush.msra.mxu0 %v912
        %2330 = vmatpush.msra.mxu0 %v908
        %2331 = vmatmul.f32.gmra.mxu0 %v767
        %v2332 = vpop.f32.mrf.mxu0
        %v2333 = vadd.f32 %v2313, %v2332
        %2334 = vdwg.mxu0
        %2335 = vmatpush.msra.mxu0 %v1032
        %2336 = vmatpush.msra.mxu0 %v1028
        %2337 = vmatpush.msra.mxu0 %v1024
        %2338 = vmatpush.msra.mxu0 %v1020
        %2339 = vmatpush.msra.mxu0 %v1016
        %2340 = vmatpush.msra.mxu0 %v1012
        %2341 = vmatpush.msra.mxu0 %v1008
        %2342 = vmatpush.msra.mxu0 %v1004
        %2343 = vmatpush.msra.mxu0 %v1000
        %2344 = vmatpush.msra.mxu0 %v996
        %2345 = vmatpush.msra.mxu0 %v992
        %2346 = vmatpush.msra.mxu0 %v988
        %2347 = vmatpush.msra.mxu0 %v984
        %2348 = vmatpush.msra.mxu0 %v980
        %2349 = vmatpush.msra.mxu0 %v976
        %2350 = vmatpush.msra.mxu0 %v972
        %2351 = vmatmul.f32.gmra.mxu0 %v768
        %v2352 = vpop.f32.mrf.mxu0
        %v2353 = vadd.f32 %v2333, %v2352
        %2354 = vdwg.mxu0
        %2355 = vmatpush.msra.mxu0 %v1096
        %2356 = vmatpush.msra.mxu0 %v1092
        %2357 = vmatpush.msra.mxu0 %v1088
        %2358 = vmatpush.msra.mxu0 %v1084
        %2359 = vmatpush.msra.mxu0 %v1080
        %2360 = vmatpush.msra.mxu0 %v1076
        %2361 = vmatpush.msra.mxu0 %v1072
        %2362 = vmatpush.msra.mxu0 %v1068
        %2363 = vmatpush.msra.mxu0 %v1064
        %2364 = vmatpush.msra.mxu0 %v1060
        %2365 = vmatpush.msra.mxu0 %v1056
        %2366 = vmatpush.msra.mxu0 %v1052
        %2367 = vmatpush.msra.mxu0 %v1048
        %2368 = vmatpush.msra.mxu0 %v1044
        %2369 = vmatpush.msra.mxu0 %v1040
        %2370 = vmatpush.msra.mxu0 %v1036
        %2371 = vmatmul.f32.gmra.mxu0 %v769
        %v2372 = vpop.f32.mrf.mxu0
        %v2373 = vadd.f32 %v2353, %v2372
        %2374 = vdwg.mxu0
        %2375 = vmatpush.msra.mxu0 %v1160
        %2376 = vmatpush.msra.mxu0 %v1156
        %2377 = vmatpush.msra.mxu0 %v1152
        %2378 = vmatpush.msra.mxu0 %v1148
        %2379 = vmatpush.msra.mxu0 %v1144
        %2380 = vmatpush.msra.mxu0 %v1140
        %2381 = vmatpush.msra.mxu0 %v1136
        %2382 = vmatpush.msra.mxu0 %v1132
        %2383 = vmatpush.msra.mxu0 %v1128
        %2384 = vmatpush.msra.mxu0 %v1124
        %2385 = vmatpush.msra.mxu0 %v1120
        %2386 = vmatpush.msra.mxu0 %v1116
        %2387 = vmatpush.msra.mxu0 %v1112
        %2388 = vmatpush.msra.mxu0 %v1108
        %2389 = vmatpush.msra.mxu0 %v1104
        %2390 = vmatpush.msra.mxu0 %v1100
        %2391 = vmatmul.f32.gmra.mxu0 %v770
        %v2392 = vpop.f32.mrf.mxu0
        %v2393 = vadd.f32 %v2373, %v2392
        %2394 = vdwg.mxu0
        %2395 = vmatpush.msra.mxu0 %v1224
        %2396 = vmatpush.msra.mxu0 %v1220
        %2397 = vmatpush.msra.mxu0 %v1216
        %2398 = vmatpush.msra.mxu0 %v1212
        %2399 = vmatpush.msra.mxu0 %v1208
        %2400 = vmatpush.msra.mxu0 %v1204
        %2401 = vmatpush.msra.mxu0 %v1200
        %2402 = vmatpush.msra.mxu0 %v1196
        %2403 = vmatpush.msra.mxu0 %v1192
        %2404 = vmatpush.msra.mxu0 %v1188
        %2405 = vmatpush.msra.mxu0 %v1184
        %2406 = vmatpush.msra.mxu0 %v1180
        %2407 = vmatpush.msra.mxu0 %v1176
        %2408 = vmatpush.msra.mxu0 %v1172
        %2409 = vmatpush.msra.mxu0 %v1168
        %2410 = vmatpush.msra.mxu0 %v1164
        %2411 = vmatmul.f32.gmra.mxu0 %v771
        %v2412 = vpop.f32.mrf.mxu0
        %v2413 = vadd.f32 %v2393, %v2412
        %2414 = vdwg.mxu0
        %2415 = vmatpush.msra.mxu0 %v1288
        %2416 = vmatpush.msra.mxu0 %v1284
        %2417 = vmatpush.msra.mxu0 %v1280
        %2418 = vmatpush.msra.mxu0 %v1276
        %2419 = vmatpush.msra.mxu0 %v1272
        %2420 = vmatpush.msra.mxu0 %v1268
        %2421 = vmatpush.msra.mxu0 %v1264
        %2422 = vmatpush.msra.mxu0 %v1260
        %2423 = vmatpush.msra.mxu0 %v1256
        %2424 = vmatpush.msra.mxu0 %v1252
        %2425 = vmatpush.msra.mxu0 %v1248
        %2426 = vmatpush.msra.mxu0 %v1244
        %2427 = vmatpush.msra.mxu0 %v1240
        %2428 = vmatpush.msra.mxu0 %v1236
        %2429 = vmatpush.msra.mxu0 %v1232
        %2430 = vmatpush.msra.mxu0 %v1228
        %2431 = vmatmul.f32.gmra.mxu0 %v772
        %v2432 = vpop.f32.mrf.mxu0
        %v2433 = vadd.f32 %v2413, %v2432
        %2434 = vdwg.mxu0
        %2435 = vmatpush.msra.mxu0 %v1352
        %2436 = vmatpush.msra.mxu0 %v1348
        %2437 = vmatpush.msra.mxu0 %v1344
        %2438 = vmatpush.msra.mxu0 %v1340
        %2439 = vmatpush.msra.mxu0 %v1336
        %2440 = vmatpush.msra.mxu0 %v1332
        %2441 = vmatpush.msra.mxu0 %v1328
        %2442 = vmatpush.msra.mxu0 %v1324
        %2443 = vmatpush.msra.mxu0 %v1320
        %2444 = vmatpush.msra.mxu0 %v1316
        %2445 = vmatpush.msra.mxu0 %v1312
        %2446 = vmatpush.msra.mxu0 %v1308
        %2447 = vmatpush.msra.mxu0 %v1304
        %2448 = vmatpush.msra.mxu0 %v1300
        %2449 = vmatpush.msra.mxu0 %v1296
        %2450 = vmatpush.msra.mxu0 %v1292
        %2451 = vmatmul.f32.gmra.mxu0 %v773
        %v2452 = vpop.f32.mrf.mxu0
        %v2453 = vadd.f32 %v2433, %v2452
        %2454 = vdwg.mxu0
        %2455 = vmatpush.msra.mxu0 %v1416
        %2456 = vmatpush.msra.mxu0 %v1412
        %2457 = vmatpush.msra.mxu0 %v1408
        %2458 = vmatpush.msra.mxu0 %v1404
        %2459 = vmatpush.msra.mxu0 %v1400
        %2460 = vmatpush.msra.mxu0 %v1396
        %2461 = vmatpush.msra.mxu0 %v1392
        %2462 = vmatpush.msra.mxu0 %v1388
        %2463 = vmatpush.msra.mxu0 %v1384
        %2464 = vmatpush.msra.mxu0 %v1380
        %2465 = vmatpush.msra.mxu0 %v1376
        %2466 = vmatpush.msra.mxu0 %v1372
        %2467 = vmatpush.msra.mxu0 %v1368
        %2468 = vmatpush.msra.mxu0 %v1364
        %2469 = vmatpush.msra.mxu0 %v1360
        %2470 = vmatpush.msra.mxu0 %v1356
        %2471 = vmatmul.f32.gmra.mxu0 %v774
        %v2472 = vpop.f32.mrf.mxu0
        %v2473 = vadd.f32 %v2453, %v2472
        %2474 = vdwg.mxu0
        %2475 = vmatpush.msra.mxu0 %v1480
        %2476 = vmatpush.msra.mxu0 %v1476
        %2477 = vmatpush.msra.mxu0 %v1472
        %2478 = vmatpush.msra.mxu0 %v1468
        %2479 = vmatpush.msra.mxu0 %v1464
        %2480 = vmatpush.msra.mxu0 %v1460
        %2481 = vmatpush.msra.mxu0 %v1456
        %2482 = vmatpush.msra.mxu0 %v1452
        %2483 = vmatpush.msra.mxu0 %v1448
        %2484 = vmatpush.msra.mxu0 %v1444
        %2485 = vmatpush.msra.mxu0 %v1440
        %2486 = vmatpush.msra.mxu0 %v1436
        %2487 = vmatpush.msra.mxu0 %v1432
        %2488 = vmatpush.msra.mxu0 %v1428
        %2489 = vmatpush.msra.mxu0 %v1424
        %2490 = vmatpush.msra.mxu0 %v1420
        %2491 = vmatmul.f32.gmra.mxu0 %v775
        %v2492 = vpop.f32.mrf.mxu0
        %v2493 = vadd.f32 %v2473, %v2492
        %2494 = vdwg.mxu0
        %2495 = vmatpush.msra.mxu0 %v1544
        %2496 = vmatpush.msra.mxu0 %v1540
        %2497 = vmatpush.msra.mxu0 %v1536
        %2498 = vmatpush.msra.mxu0 %v1532
        %2499 = vmatpush.msra.mxu0 %v1528
        %2500 = vmatpush.msra.mxu0 %v1524
        %2501 = vmatpush.msra.mxu0 %v1520
        %2502 = vmatpush.msra.mxu0 %v1516
        %2503 = vmatpush.msra.mxu0 %v1512
        %2504 = vmatpush.msra.mxu0 %v1508
        %2505 = vmatpush.msra.mxu0 %v1504
        %2506 = vmatpush.msra.mxu0 %v1500
        %2507 = vmatpush.msra.mxu0 %v1496
        %2508 = vmatpush.msra.mxu0 %v1492
        %2509 = vmatpush.msra.mxu0 %v1488
        %2510 = vmatpush.msra.mxu0 %v1484
        %2511 = vmatmul.f32.gmra.mxu0 %v776
        %v2512 = vpop.f32.mrf.mxu0
        %v2513 = vadd.f32 %v2493, %v2512
        %2514 = vdwg.mxu0
        %v2515 = vmax.f32 %v1793, 0.0
        %v2516 = vmax.f32 %v2033, 0.0
        %v2517 = vmax.f32 %v2273, 0.0
        %v2518 = vmax.f32 %v2513, 0.0
        %2519 = vst [vmem:[%s303] sm:$0xff] %v2515
        %2520 = vst [vmem:[%s303 + $0x8] sm:$0xff] %v2516
        %2521 = vst [vmem:[%s303 + $0x10] sm:$0xff] %v2517
        %2522 = vst [vmem:[%s303 + $0x18] sm:$0xff] %v2518
        %s2523 = sand.u32 %s142, 1
        %s2524 = scalar_lea.sflag [#allocation4], %s2523
        %s2525 = sand.u32 %s142, 1
        %s2526 = smul.addr %s2525, 32
        %s2527 = scalar_lea.vmem [#allocation11], %s2526
        // Predicated region
        $region61: #{tpu_custom_call.1} parent=39 // pred_check
          %p2528 = pneg %p152
        $region62: #{tpu_custom_call.1} parent=39 // pred_check_branch
          %2530 = sbr.rel (%p2528) target = $region64
        $region63: #{tpu_custom_call.1} parent=39 // pred_region
          %2532 = vsyncadd %s2524, 0
          %s2533 = smul.addr %s24, 4
          %s2534 = smul.addr %s2533, 8
          %s2535 = scalar_lea.hbm %s5, %s2534
          %s2537 = sshll.u32 %s2527, 4
          %s2538 = int_to_ptr.vmem [resolvable:$true] %s2537
          %s2539 = sshll.u32 %s2535, 4
          %s2540 = int_to_ptr.hbm [resolvable:$true] %s2539
          %2542 = dma.vmem_to_hbm [thread:$0]  %s2538, 512, %s2540, %s2524
        $region64: #{tpu_custom_call.1} parent=39 // pred_fallthru
          _
      $region40: #{tpu_custom_call.1} parent=5 // pred_fallthru
        _
      %p2543 = scmp.le.s32.totalorder 2, %s19
      // Predicated region
      $region65: #{tpu_custom_call.1} parent=5 // pred_check
        %p2544 = pneg %p2543
      $region66: #{tpu_custom_call.1} parent=5 // pred_check_branch
        %2546 = sbr.rel (%p2544) target = $region68
      $region67: #{tpu_custom_call.1} parent=5 // pred_region
        %s2547 = ssub.s32 %s19, 2
        // Predicated region
        $region69: #{tpu_custom_call.1} parent=67 // pred_check
          %p2548 = pneg %p158
        $region70: #{tpu_custom_call.1} parent=67 // pred_check_branch
          %2550 = sbr.rel (%p2548) target = $region72
        $region71: #{tpu_custom_call.1} parent=67 // pred_region
          %s2551 = sand.u32 %s143, 1
          %s2552 = scalar_lea.sflag [#allocation4], %s2551
          %s2553 = sand.u32 %s143, 1
          %s2554 = smul.addr %s2553, 32
          %s2555 = scalar_lea.vmem [#allocation11], %s2554
          %2557 = dma.done %s2552, 512
        $region72: #{tpu_custom_call.1} parent=67 // pred_fallthru
          _
      $region68: #{tpu_custom_call.1} parent=5 // pred_fallthru
        _
    $region6: #{tpu_custom_call.1} parent=1 // loop_footer
      %s23 = sadd.s32 1, %s19
    $region7: #{tpu_custom_call.1} parent=1 // loop_footer_branch
      %18 = sbr.rel target = $region3
    $region8: #{tpu_custom_call.1} parent=1 // loop_exit
      _
    %2558 = vsyncpa [#allocation3], 1
    %s2559 = scalar_lea.sflag [#allocation3], 1
    %2560 = vsyncpa %s2559, 1
    %2561 = vsyncpa [#allocation6], 1
    %2562 = vsyncpa [#allocation9], 1
    %2563 = vsyncpa [#allocation4], 1
    %s2564 = scalar_lea.sflag [#allocation4], 1
    %2565 = vsyncpa %s2564, 1

</llo_original>
